<compile_context>
chip_gen: v6e
topology: v6e:2x2x1
jax: 0.10.0
libtpu: 0.0.40
codegen_flags: <defaults>
</compile_context>

<pallas_src>
import functools

import jax
import jax.numpy as jnp
from jax import lax
from jax.experimental import pallas as pl
from jax.experimental.pallas import tpu as pltpu


def _round_up(x, m):
    return ((x + m - 1) // m) * m


def _pad2(a, rows, cols):
    out = jnp.zeros((rows, cols), jnp.float32)
    return out.at[: a.shape[0], : a.shape[1]].set(a.astype(jnp.float32))


# dot_general dimension numbers (no explicit transposes anywhere)
_DN_X_WT = (((1,), (1,)), ((), ()))   # x @ W.T      : contract last vs last
_DN_GT_A = (((0,), (0,)), ((), ()))   # dz.T @ a     : contract dim0 vs dim0
_DN_MM = (((1,), (0,)), ((), ()))     # dz @ W       : standard matmul


def melu_kernel(sx_ref, sy_ref, qx_ref,
                w1_ref, b1_ref, w2_ref, b2_ref, w3_ref, b3_ref,
                out_ref,
                *, num_local_update, local_lr, n_support):
    x = sx_ref[0]          # [NS, Dp]
    y = sy_ref[0]          # [NS, 1]
    xq = qx_ref[0]         # [NQ, Dp]

    # fast weights start from the current model weights; kept as SSA values
    w1 = w1_ref[...]       # [H1p, Dp]
    b1 = b1_ref[...]       # [1, H1p]
    w2 = w2_ref[...]       # [H2p, H1p]
    b2 = b2_ref[...]       # [1, H2p]
    w3 = w3_ref[...]       # [1, H2p]
    b3 = b3_ref[0]         # scalar (SMEM)

    lr = jnp.float32(local_lr)
    coef = jnp.float32(2.0 / n_support)   # d/dyp of mean((yp-y)^2)

    # Inner-loop local adaptation (unrolled; num_local_update is static & small)
    for _ in range(num_local_update):
        # ---- forward on support set ------------------------------------
        z1 = lax.dot_general(x, w1, _DN_X_WT,
                             preferred_element_type=jnp.float32) + b1     # [NS, H1p]
        a1 = jnp.maximum(z1, 0.0)
        z2 = lax.dot_general(a1, w2, _DN_X_WT,
                             preferred_element_type=jnp.float32) + b2     # [NS, H2p]
        a2 = jnp.maximum(z2, 0.0)
        # rank-1 head on VPU/XLU instead of a degenerate MXU pass
        yp = jnp.sum(a2 * w3, axis=1, keepdims=True) + b3                 # [NS, 1]

        # ---- backprop of mean((yp - y)^2) ------------------------------
        dyp = coef * (yp - y)                                             # [NS, 1]

        g_w3 = jnp.sum(dyp * a2, axis=0, keepdims=True)                   # [1, H2p]
        g_b3 = jnp.sum(dyp)                                               # scalar

        da2 = dyp * w3                                                    # [NS, H2p]
        dz2 = jnp.where(z2 > 0.0, da2, 0.0)
        g_w2 = lax.dot_general(dz2, a1, _DN_GT_A,
                               preferred_element_type=jnp.float32)        # [H2p, H1p]
        g_b2 = jnp.sum(dz2, axis=0, keepdims=True)                        # [1, H2p]

        da1 = lax.dot_general(dz2, w2, _DN_MM,
                              preferred_element_type=jnp.float32)         # [NS, H1p]
        dz1 = jnp.where(z1 > 0.0, da1, 0.0)
        g_w1 = lax.dot_general(dz1, x, _DN_GT_A,
                               preferred_element_type=jnp.float32)        # [H1p, Dp]
        g_b1 = jnp.sum(dz1, axis=0, keepdims=True)                        # [1, H1p]

        # ---- SGD step on the local-update target weights ----------------
        w1 = w1 - lr * g_w1
        b1 = b1 - lr * g_b1
        w2 = w2 - lr * g_w2
        b2 = b2 - lr * g_b2
        w3 = w3 - lr * g_w3
        b3 = b3 - lr * g_b3

    # ---- query forward with the adapted (fast) weights ---------------------
    z1 = lax.dot_general(xq, w1, _DN_X_WT, preferred_element_type=jnp.float32) + b1
    a1 = jnp.maximum(z1, 0.0)
    z2 = lax.dot_general(a1, w2, _DN_X_WT, preferred_element_type=jnp.float32) + b2
    a2 = jnp.maximum(z2, 0.0)
    out_ref[0, 0, :] = jnp.sum(a2 * w3, axis=1) + b3                      # [NQ]


@functools.partial(jax.jit, static_argnames=("num_local_update", "local_lr"))
def melu_forward(support_x, support_y, query_x, params, *, num_local_update, local_lr):
    """Batched MeLU.forward: local adaptation per task, prediction on each query set.

    support_x: [T, NS, D], support_y: [T, NS], query_x: [T, NQ, D]
    returns:   [T, NQ]
    """
    w1, b1, w2, b2, w3, b3 = params
    T, NS, D = support_x.shape
    NQ = query_x.shape[1]
    H1, H2 = w1.shape[0], w2.shape[0]

    # pad feature / hidden dims to full 128-lane width (exact: padded units are dead)
    Dp = _round_up(D, 128)
    H1p = _round_up(H1, 128)
    H2p = _round_up(H2, 128)

    sx = jnp.zeros((T, NS, Dp), jnp.float32).at[:, :, :D].set(support_x.astype(jnp.float32))
    qx = jnp.zeros((T, NQ, Dp), jnp.float32).at[:, :, :D].set(query_x.astype(jnp.float32))
    sy = support_y.reshape(T, NS, 1).astype(jnp.float32)   # matches .view(-1, 1)

    w1p = _pad2(w1, H1p, Dp)
    b1p = _pad2(b1, 1, H1p)
    w2p = _pad2(w2, H2p, H1p)
    b2p = _pad2(b2, 1, H2p)
    w3p = _pad2(w3, 1, H2p)
    b3s = b3.reshape(-1).astype(jnp.float32)               # (1,) scalar in SMEM

    kernel = functools.partial(
        melu_kernel,
        num_local_update=num_local_update,
        local_lr=local_lr,
        n_support=NS,
    )

    out = pl.pallas_call(
        kernel,
        out_shape=jax.ShapeDtypeStruct((T, 1, NQ), jnp.float32),
        grid=(T,),
        in_specs=[
            pl.BlockSpec((1, NS, Dp), lambda t: (t, 0, 0)),   # support_x (per task)
            pl.BlockSpec((1, NS, 1), lambda t: (t, 0, 0)),    # support_y (per task)
            pl.BlockSpec((1, NQ, Dp), lambda t: (t, 0, 0)),   # query_x   (per task)
            pl.BlockSpec((H1p, Dp), lambda t: (0, 0)),        # fc1.weight (shared)
            pl.BlockSpec((1, H1p), lambda t: (0, 0)),         # fc1.bias
            pl.BlockSpec((H2p, H1p), lambda t: (0, 0)),       # fc2.weight
            pl.BlockSpec((1, H2p), lambda t: (0, 0)),         # fc2.bias
            pl.BlockSpec((1, H2p), lambda t: (0, 0)),         # linear_out.weight
            pl.BlockSpec(memory_space=pltpu.MemorySpace.SMEM),  # linear_out.bias (scalar)
        ],
        out_specs=pl.BlockSpec((1, 1, NQ), lambda t: (t, 0, 0)),
        compiler_params=pltpu.CompilerParams(
            dimension_semantics=("parallel",),
        ),
    )(sx, sy, qx, w1p, b1p, w2p, b2p, w3p, b3s)

    return out.reshape(T, NQ)


def melu_reference_single(support_x, support_y, query_x, params, *, num_local_update, local_lr):
    """Pure-JAX reference of one task (unpadded), for a correctness check."""
    w1, b1, w2, b2, w3, b3 = [p.astype(jnp.float32) for p in params]
    y = support_y.reshape(-1, 1).astype(jnp.float32)
    n = support_x.shape[0]

    def fwd(x, w1, b1, w2, b2, w3, b3):
        z1 = x @ w1.T + b1
        a1 = jnp.maximum(z1, 0.0)
        z2 = a1 @ w2.T + b2
        a2 = jnp.maximum(z2, 0.0)
        return z1, a1, z2, a2, a2 @ w3.T + b3

    for _ in range(num_local_update):
        z1, a1, z2, a2, yp = fwd(support_x, w1, b1, w2, b2, w3, b3)
        dyp = 2.0 / n * (yp - y)
        g_w3 = dyp.T @ a2
        g_b3 = jnp.sum(dyp, axis=0, keepdims=True)
        dz2 = jnp.where(z2 > 0.0, dyp @ w3, 0.0)
        g_w2 = dz2.T @ a1
        g_b2 = jnp.sum(dz2, axis=0, keepdims=True)
        dz1 = jnp.where(z1 > 0.0, dz2 @ w2, 0.0)
        g_w1 = dz1.T @ support_x
        g_b1 = jnp.sum(dz1, axis=0, keepdims=True)
        w1, b1 = w1 - local_lr * g_w1, b1 - local_lr * g_b1
        w2, b2 = w2 - local_lr * g_w2, b2 - local_lr * g_b2
        w3, b3 = w3 - local_lr * g_w3, b3 - local_lr * g_b3

    return fwd(query_x, w1, b1, w2, b2, w3, b3)[-1]


if __name__ == "__main__":
    # small shapes consistent with the module's MLP head
    D, H1, H2 = 32, 64, 64        # concat-embedding dim, fc1 hidden, fc2 hidden
    NS, NQ = 8, 8                 # support / query set sizes
    T = 8                         # number of tasks (users) batched into one call
    NUM_LOCAL_UPDATE = 2
    LOCAL_LR = 5e-3               # config['local_lr']

    key = jax.random.PRNGKey(0)
    ks = jax.random.split(key, 9)

    # deterministic parameter init (shapes from user_preference_estimator)
    w1 = 0.1 * jax.random.normal(ks[0], (H1, D), jnp.float32)   # fc1.weight
    b1 = 0.1 * jax.random.normal(ks[1], (1, H1), jnp.float32)   # fc1.bias
    w2 = 0.1 * jax.random.normal(ks[2], (H2, H1), jnp.float32)  # fc2.weight
    b2 = 0.1 * jax.random.normal(ks[3], (1, H2), jnp.float32)   # fc2.bias
    w3 = 0.1 * jax.random.normal(ks[4], (1, H2), jnp.float32)   # linear_out.weight
    b3 = 0.1 * jax.random.normal(ks[5], (1, 1), jnp.float32)    # linear_out.bias
    params = (w1, b1, w2, b2, w3, b3)

    support_x = jax.random.normal(ks[6], (T, NS, D), jnp.float32)
    support_y = jax.random.normal(ks[7], (T, NS), jnp.float32)
    query_x = jax.random.normal(ks[8], (T, NQ, D), jnp.float32)

    out = melu_forward(support_x, support_y, query_x, params,
                       num_local_update=NUM_LOCAL_UPDATE, local_lr=LOCAL_LR)
    out = jax.block_until_ready(out)

    # per-task pure-JAX reference
    max_err = 0.0
    for t in range(T):
        ref_t = melu_reference_single(support_x[t], support_y[t], query_x[t], params,
                                      num_local_update=NUM_LOCAL_UPDATE,
                                      local_lr=LOCAL_LR).reshape(-1)
        err = float(jnp.max(jnp.abs(out[t] - ref_t)))
        max_err = max(max_err, err)
        if not jnp.allclose(out[t], ref_t, rtol=1e-3, atol=1e-3):
            raise AssertionError(f"mismatch on task {t}: max abs err {err}")

    print("KERNEL_OK")
</pallas_src>

<mosaic_0001>
module attributes {stable_mosaic.version = 11 : i64} {
  func.func @melu_kernel(%arg0: i32, %arg1: memref<1x8x128xf32, #tpu.memory_space<vmem>>, %arg2: memref<1x8x1xf32, #tpu.memory_space<vmem>>, %arg3: memref<1x8x128xf32, #tpu.memory_space<vmem>>, %arg4: memref<128x128xf32, #tpu.memory_space<vmem>>, %arg5: memref<1x128xf32, #tpu.memory_space<vmem>>, %arg6: memref<128x128xf32, #tpu.memory_space<vmem>>, %arg7: memref<1x128xf32, #tpu.memory_space<vmem>>, %arg8: memref<1x128xf32, #tpu.memory_space<vmem>>, %arg9: memref<1xf32, #tpu.memory_space<smem>>, %arg10: memref<1x1x8xf32, #tpu.memory_space<vmem>>) attributes {dimension_semantics = [#tpu.dimension_semantics<parallel>], iteration_bounds = array<i64: 8>, scalar_prefetch = 0 : i64, scratch_operands = 0 : i64, tpu.core_type = #tpu.core_type<tc>, window_params = [{transform_indices = @transform_0, window_bounds = array<i64: 1, 8, 128>}, {transform_indices = @transform_1, window_bounds = array<i64: 1, 8, 1>}, {transform_indices = @transform_2, window_bounds = array<i64: 1, 8, 128>}, {pipeline_mode = #tpu.pipeline_mode<synchronous>, transform_indices = @transform_3, window_bounds = array<i64: 128, 128>}, {pipeline_mode = #tpu.pipeline_mode<synchronous>, transform_indices = @transform_4, window_bounds = array<i64: 1, 128>}, {pipeline_mode = #tpu.pipeline_mode<synchronous>, transform_indices = @transform_5, window_bounds = array<i64: 128, 128>}, {pipeline_mode = #tpu.pipeline_mode<synchronous>, transform_indices = @transform_6, window_bounds = array<i64: 1, 128>}, {pipeline_mode = #tpu.pipeline_mode<synchronous>, transform_indices = @transform_7, window_bounds = array<i64: 1, 128>}, {transform_indices = @transform_8, window_bounds = array<i64: 1>}, {transform_indices = @transform_9, window_bounds = array<i64: 1, 1, 8>}]} {
    %c0 = arith.constant 0 : index
    %c0_0 = arith.constant 0 : index
    %c0_1 = arith.constant 0 : index
    %0 = vector.load %arg1[%c0, %c0_0, %c0_1] : memref<1x8x128xf32, #tpu.memory_space<vmem>>, vector<1x8x128xf32>
    %1 = vector.shape_cast %0 : vector<1x8x128xf32> to vector<8x128xf32>
    %c0_2 = arith.constant 0 : index
    %c0_3 = arith.constant 0 : index
    %c0_4 = arith.constant 0 : index
    %2 = vector.load %arg2[%c0_2, %c0_3, %c0_4] : memref<1x8x1xf32, #tpu.memory_space<vmem>>, vector<1x8x1xf32>
    %3 = vector.shape_cast %2 : vector<1x8x1xf32> to vector<8x1xf32>
    %c0_5 = arith.constant 0 : index
    %c0_6 = arith.constant 0 : index
    %c0_7 = arith.constant 0 : index
    %4 = vector.load %arg3[%c0_5, %c0_6, %c0_7] : memref<1x8x128xf32, #tpu.memory_space<vmem>>, vector<1x8x128xf32>
    %5 = vector.shape_cast %4 : vector<1x8x128xf32> to vector<8x128xf32>
    %c0_8 = arith.constant 0 : index
    %c0_9 = arith.constant 0 : index
    %6 = vector.load %arg4[%c0_8, %c0_9] : memref<128x128xf32, #tpu.memory_space<vmem>>, vector<128x128xf32>
    %c0_10 = arith.constant 0 : index
    %c0_11 = arith.constant 0 : index
    %7 = vector.load %arg5[%c0_10, %c0_11] : memref<1x128xf32, #tpu.memory_space<vmem>>, vector<1x128xf32>
    %c0_12 = arith.constant 0 : index
    %c0_13 = arith.constant 0 : index
    %8 = vector.load %arg6[%c0_12, %c0_13] : memref<128x128xf32, #tpu.memory_space<vmem>>, vector<128x128xf32>
    %c0_14 = arith.constant 0 : index
    %c0_15 = arith.constant 0 : index
    %9 = vector.load %arg7[%c0_14, %c0_15] : memref<1x128xf32, #tpu.memory_space<vmem>>, vector<1x128xf32>
    %c0_16 = arith.constant 0 : index
    %c0_17 = arith.constant 0 : index
    %10 = vector.load %arg8[%c0_16, %c0_17] : memref<1x128xf32, #tpu.memory_space<vmem>>, vector<1x128xf32>
    %c0_18 = arith.constant 0 : index
    %11 = memref.load %arg9[%c0_18] : memref<1xf32, #tpu.memory_space<smem>>
    %cst = arith.constant dense<0.000000e+00> : vector<8x128xf32>
    %12 = tpu.matmul %1, %6, %cst {dimension_numbers = #tpu.dot_dimension_numbers<[1], [1], [0], [0], [0, 0, 1, 0], [], []>} : vector<8x128xf32>, vector<128x128xf32>, vector<8x128xf32> -> vector<8x128xf32>
    %13 = vector.broadcast %7 : vector<1x128xf32> to vector<8x128xf32>
    %14 = arith.addf %12, %13 : vector<8x128xf32>
    %cst_19 = arith.constant 0.000000e+00 : f32
    %15 = vector.broadcast %cst_19 : f32 to vector<8x128xf32>
    %16 = arith.maximumf %14, %15 : vector<8x128xf32>
    %cst_20 = arith.constant dense<0.000000e+00> : vector<8x128xf32>
    %17 = tpu.matmul %16, %8, %cst_20 {dimension_numbers = #tpu.dot_dimension_numbers<[1], [1], [0], [0], [0, 0, 1, 0], [], []>} : vector<8x128xf32>, vector<128x128xf32>, vector<8x128xf32> -> vector<8x128xf32>
    %18 = vector.broadcast %9 : vector<1x128xf32> to vector<8x128xf32>
    %19 = arith.addf %17, %18 : vector<8x128xf32>
    %cst_21 = arith.constant 0.000000e+00 : f32
    %20 = vector.broadcast %cst_21 : f32 to vector<8x128xf32>
    %21 = arith.maximumf %19, %20 : vector<8x128xf32>
    %22 = vector.broadcast %10 : vector<1x128xf32> to vector<8x128xf32>
    %23 = arith.mulf %21, %22 : vector<8x128xf32>
    %cst_22 = arith.constant dense<0.000000e+00> : vector<8xf32>
    %24 = vector.multi_reduction <add>, %23, %cst_22 [1] : vector<8x128xf32> to vector<8xf32>
    %25 = vector.shape_cast %24 : vector<8xf32> to vector<8x1xf32>
    %26 = vector.broadcast %11 : f32 to vector<8x1xf32>
    %27 = arith.addf %25, %26 : vector<8x1xf32>
    %28 = arith.subf %27, %3 : vector<8x1xf32>
    %cst_23 = arith.constant 2.500000e-01 : f32
    %29 = vector.broadcast %cst_23 : f32 to vector<8x1xf32>
    %30 = arith.mulf %29, %28 : vector<8x1xf32>
    %31 = vector.broadcast %30 : vector<8x1xf32> to vector<8x128xf32>
    %32 = arith.mulf %31, %21 : vector<8x128xf32>
    %cst_24 = arith.constant dense<0.000000e+00> : vector<128xf32>
    %33 = vector.multi_reduction <add>, %32, %cst_24 [0] : vector<8x128xf32> to vector<128xf32>
    %34 = vector.shape_cast %33 : vector<128xf32> to vector<1x128xf32>
    %35 = vector.shape_cast %30 : vector<8x1xf32> to vector<1x8x1xf32>
    %cst_25 = arith.constant dense<0.000000e+00> : vector<1xf32>
    %36 = vector.multi_reduction <add>, %35, %cst_25 [1, 2] : vector<1x8x1xf32> to vector<1xf32>
    %37 = vector.shape_cast %36 : vector<1xf32> to vector<1x1x1xf32>
    %38 = vector.extract %37[0, 0, 0] : f32 from vector<1x1x1xf32>
    %39 = vector.broadcast %30 : vector<8x1xf32> to vector<8x128xf32>
    %40 = vector.broadcast %10 : vector<1x128xf32> to vector<8x128xf32>
    %41 = arith.mulf %39, %40 : vector<8x128xf32>
    %cst_26 = arith.constant 0.000000e+00 : f32
    %42 = vector.broadcast %cst_26 : f32 to vector<8x128xf32>
    %43 = arith.cmpf ogt, %19, %42 : vector<8x128xf32>
    %cst_27 = arith.constant 0.000000e+00 : f32
    %44 = vector.broadcast %cst_27 : f32 to vector<8x128xf32>
    %45 = arith.select %43, %41, %44 : vector<8x128xi1>, vector<8x128xf32>
    %cst_28 = arith.constant dense<0.000000e+00> : vector<128x128xf32>
    %46 = tpu.matmul %45, %16, %cst_28 {dimension_numbers = #tpu.dot_dimension_numbers<[0], [0], [1], [1], [0, 1, 1, 1], [], []>} : vector<8x128xf32>, vector<8x128xf32>, vector<128x128xf32> -> vector<128x128xf32>
    %cst_29 = arith.constant dense<0.000000e+00> : vector<128xf32>
    %47 = vector.multi_reduction <add>, %45, %cst_29 [0] : vector<8x128xf32> to vector<128xf32>
    %48 = vector.shape_cast %47 : vector<128xf32> to vector<1x128xf32>
    %cst_30 = arith.constant dense<0.000000e+00> : vector<8x128xf32>
    %49 = tpu.matmul %45, %8, %cst_30 {dimension_numbers = #tpu.dot_dimension_numbers<[1], [0], [0], [1], [0, 0, 1, 1], [], []>} : vector<8x128xf32>, vector<128x128xf32>, vector<8x128xf32> -> vector<8x128xf32>
    %cst_31 = arith.constant 0.000000e+00 : f32
    %50 = vector.broadcast %cst_31 : f32 to vector<8x128xf32>
    %51 = arith.cmpf ogt, %14, %50 : vector<8x128xf32>
    %cst_32 = arith.constant 0.000000e+00 : f32
    %52 = vector.broadcast %cst_32 : f32 to vector<8x128xf32>
    %53 = arith.select %51, %49, %52 : vector<8x128xi1>, vector<8x128xf32>
    %cst_33 = arith.constant dense<0.000000e+00> : vector<128x128xf32>
    %54 = tpu.matmul %53, %1, %cst_33 {dimension_numbers = #tpu.dot_dimension_numbers<[0], [0], [1], [1], [0, 1, 1, 1], [], []>} : vector<8x128xf32>, vector<8x128xf32>, vector<128x128xf32> -> vector<128x128xf32>
    %cst_34 = arith.constant dense<0.000000e+00> : vector<128xf32>
    %55 = vector.multi_reduction <add>, %53, %cst_34 [0] : vector<8x128xf32> to vector<128xf32>
    %56 = vector.shape_cast %55 : vector<128xf32> to vector<1x128xf32>
    %cst_35 = arith.constant 5.000000e-03 : f32
    %57 = vector.broadcast %cst_35 : f32 to vector<128x128xf32>
    %58 = arith.mulf %57, %54 : vector<128x128xf32>
    %59 = arith.subf %6, %58 : vector<128x128xf32>
    %cst_36 = arith.constant 5.000000e-03 : f32
    %60 = vector.broadcast %cst_36 : f32 to vector<1x128xf32>
    %61 = arith.mulf %60, %56 : vector<1x128xf32>
    %62 = arith.subf %7, %61 : vector<1x128xf32>
    %cst_37 = arith.constant 5.000000e-03 : f32
    %63 = vector.broadcast %cst_37 : f32 to vector<128x128xf32>
    %64 = arith.mulf %63, %46 : vector<128x128xf32>
    %65 = arith.subf %8, %64 : vector<128x128xf32>
    %cst_38 = arith.constant 5.000000e-03 : f32
    %66 = vector.broadcast %cst_38 : f32 to vector<1x128xf32>
    %67 = arith.mulf %66, %48 : vector<1x128xf32>
    %68 = arith.subf %9, %67 : vector<1x128xf32>
    %cst_39 = arith.constant 5.000000e-03 : f32
    %69 = vector.broadcast %cst_39 : f32 to vector<1x128xf32>
    %70 = arith.mulf %69, %34 : vector<1x128xf32>
    %71 = arith.subf %10, %70 : vector<1x128xf32>
    %cst_40 = arith.constant 5.000000e-03 : f32
    %72 = arith.mulf %cst_40, %38 : f32
    %73 = arith.subf %11, %72 : f32
    %cst_41 = arith.constant dense<0.000000e+00> : vector<8x128xf32>
    %74 = tpu.matmul %1, %59, %cst_41 {dimension_numbers = #tpu.dot_dimension_numbers<[1], [1], [0], [0], [0, 0, 1, 0], [], []>} : vector<8x128xf32>, vector<128x128xf32>, vector<8x128xf32> -> vector<8x128xf32>
    %75 = vector.broadcast %62 : vector<1x128xf32> to vector<8x128xf32>
    %76 = arith.addf %74, %75 : vector<8x128xf32>
    %cst_42 = arith.constant 0.000000e+00 : f32
    %77 = vector.broadcast %cst_42 : f32 to vector<8x128xf32>
    %78 = arith.maximumf %76, %77 : vector<8x128xf32>
    %cst_43 = arith.constant dense<0.000000e+00> : vector<8x128xf32>
    %79 = tpu.matmul %78, %65, %cst_43 {dimension_numbers = #tpu.dot_dimension_numbers<[1], [1], [0], [0], [0, 0, 1, 0], [], []>} : vector<8x128xf32>, vector<128x128xf32>, vector<8x128xf32> -> vector<8x128xf32>
    %80 = vector.broadcast %68 : vector<1x128xf32> to vector<8x128xf32>
    %81 = arith.addf %79, %80 : vector<8x128xf32>
    %cst_44 = arith.constant 0.000000e+00 : f32
    %82 = vector.broadcast %cst_44 : f32 to vector<8x128xf32>
    %83 = arith.maximumf %81, %82 : vector<8x128xf32>
    %84 = vector.broadcast %71 : vector<1x128xf32> to vector<8x128xf32>
    %85 = arith.mulf %83, %84 : vector<8x128xf32>
    %cst_45 = arith.constant dense<0.000000e+00> : vector<8xf32>
    %86 = vector.multi_reduction <add>, %85, %cst_45 [1] : vector<8x128xf32> to vector<8xf32>
    %87 = vector.shape_cast %86 : vector<8xf32> to vector<8x1xf32>
    %88 = vector.broadcast %73 : f32 to vector<8x1xf32>
    %89 = arith.addf %87, %88 : vector<8x1xf32>
    %90 = arith.subf %89, %3 : vector<8x1xf32>
    %cst_46 = arith.constant 2.500000e-01 : f32
    %91 = vector.broadcast %cst_46 : f32 to vector<8x1xf32>
    %92 = arith.mulf %91, %90 : vector<8x1xf32>
    %93 = vector.broadcast %92 : vector<8x1xf32> to vector<8x128xf32>
    %94 = arith.mulf %93, %83 : vector<8x128xf32>
    %cst_47 = arith.constant dense<0.000000e+00> : vector<128xf32>
    %95 = vector.multi_reduction <add>, %94, %cst_47 [0] : vector<8x128xf32> to vector<128xf32>
    %96 = vector.shape_cast %95 : vector<128xf32> to vector<1x128xf32>
    %97 = vector.shape_cast %92 : vector<8x1xf32> to vector<1x8x1xf32>
    %cst_48 = arith.constant dense<0.000000e+00> : vector<1xf32>
    %98 = vector.multi_reduction <add>, %97, %cst_48 [1, 2] : vector<1x8x1xf32> to vector<1xf32>
    %99 = vector.shape_cast %98 : vector<1xf32> to vector<1x1x1xf32>
    %100 = vector.extract %99[0, 0, 0] : f32 from vector<1x1x1xf32>
    %101 = vector.broadcast %92 : vector<8x1xf32> to vector<8x128xf32>
    %102 = vector.broadcast %71 : vector<1x128xf32> to vector<8x128xf32>
    %103 = arith.mulf %101, %102 : vector<8x128xf32>
    %cst_49 = arith.constant 0.000000e+00 : f32
    %104 = vector.broadcast %cst_49 : f32 to vector<8x128xf32>
    %105 = arith.cmpf ogt, %81, %104 : vector<8x128xf32>
    %cst_50 = arith.constant 0.000000e+00 : f32
    %106 = vector.broadcast %cst_50 : f32 to vector<8x128xf32>
    %107 = arith.select %105, %103, %106 : vector<8x128xi1>, vector<8x128xf32>
    %cst_51 = arith.constant dense<0.000000e+00> : vector<128x128xf32>
    %108 = tpu.matmul %107, %78, %cst_51 {dimension_numbers = #tpu.dot_dimension_numbers<[0], [0], [1], [1], [0, 1, 1, 1], [], []>} : vector<8x128xf32>, vector<8x128xf32>, vector<128x128xf32> -> vector<128x128xf32>
    %cst_52 = arith.constant dense<0.000000e+00> : vector<128xf32>
    %109 = vector.multi_reduction <add>, %107, %cst_52 [0] : vector<8x128xf32> to vector<128xf32>
    %110 = vector.shape_cast %109 : vector<128xf32> to vector<1x128xf32>
    %cst_53 = arith.constant dense<0.000000e+00> : vector<8x128xf32>
    %111 = tpu.matmul %107, %65, %cst_53 {dimension_numbers = #tpu.dot_dimension_numbers<[1], [0], [0], [1], [0, 0, 1, 1], [], []>} : vector<8x128xf32>, vector<128x128xf32>, vector<8x128xf32> -> vector<8x128xf32>
    %cst_54 = arith.constant 0.000000e+00 : f32
    %112 = vector.broadcast %cst_54 : f32 to vector<8x128xf32>
    %113 = arith.cmpf ogt, %76, %112 : vector<8x128xf32>
    %cst_55 = arith.constant 0.000000e+00 : f32
    %114 = vector.broadcast %cst_55 : f32 to vector<8x128xf32>
    %115 = arith.select %113, %111, %114 : vector<8x128xi1>, vector<8x128xf32>
    %cst_56 = arith.constant dense<0.000000e+00> : vector<128x128xf32>
    %116 = tpu.matmul %115, %1, %cst_56 {dimension_numbers = #tpu.dot_dimension_numbers<[0], [0], [1], [1], [0, 1, 1, 1], [], []>} : vector<8x128xf32>, vector<8x128xf32>, vector<128x128xf32> -> vector<128x128xf32>
    %cst_57 = arith.constant dense<0.000000e+00> : vector<128xf32>
    %117 = vector.multi_reduction <add>, %115, %cst_57 [0] : vector<8x128xf32> to vector<128xf32>
    %118 = vector.shape_cast %117 : vector<128xf32> to vector<1x128xf32>
    %cst_58 = arith.constant 5.000000e-03 : f32
    %119 = vector.broadcast %cst_58 : f32 to vector<128x128xf32>
    %120 = arith.mulf %119, %116 : vector<128x128xf32>
    %121 = arith.subf %59, %120 : vector<128x128xf32>
    %cst_59 = arith.constant 5.000000e-03 : f32
    %122 = vector.broadcast %cst_59 : f32 to vector<1x128xf32>
    %123 = arith.mulf %122, %118 : vector<1x128xf32>
    %124 = arith.subf %62, %123 : vector<1x128xf32>
    %cst_60 = arith.constant 5.000000e-03 : f32
    %125 = vector.broadcast %cst_60 : f32 to vector<128x128xf32>
    %126 = arith.mulf %125, %108 : vector<128x128xf32>
    %127 = arith.subf %65, %126 : vector<128x128xf32>
    %cst_61 = arith.constant 5.000000e-03 : f32
    %128 = vector.broadcast %cst_61 : f32 to vector<1x128xf32>
    %129 = arith.mulf %128, %110 : vector<1x128xf32>
    %130 = arith.subf %68, %129 : vector<1x128xf32>
    %cst_62 = arith.constant 5.000000e-03 : f32
    %131 = vector.broadcast %cst_62 : f32 to vector<1x128xf32>
    %132 = arith.mulf %131, %96 : vector<1x128xf32>
    %133 = arith.subf %71, %132 : vector<1x128xf32>
    %cst_63 = arith.constant 5.000000e-03 : f32
    %134 = arith.mulf %cst_63, %100 : f32
    %135 = arith.subf %73, %134 : f32
    %cst_64 = arith.constant dense<0.000000e+00> : vector<8x128xf32>
    %136 = tpu.matmul %5, %121, %cst_64 {dimension_numbers = #tpu.dot_dimension_numbers<[1], [1], [0], [0], [0, 0, 1, 0], [], []>} : vector<8x128xf32>, vector<128x128xf32>, vector<8x128xf32> -> vector<8x128xf32>
    %137 = vector.broadcast %124 : vector<1x128xf32> to vector<8x128xf32>
    %138 = arith.addf %136, %137 : vector<8x128xf32>
    %cst_65 = arith.constant 0.000000e+00 : f32
    %139 = vector.broadcast %cst_65 : f32 to vector<8x128xf32>
    %140 = arith.maximumf %138, %139 : vector<8x128xf32>
    %cst_66 = arith.constant dense<0.000000e+00> : vector<8x128xf32>
    %141 = tpu.matmul %140, %127, %cst_66 {dimension_numbers = #tpu.dot_dimension_numbers<[1], [1], [0], [0], [0, 0, 1, 0], [], []>} : vector<8x128xf32>, vector<128x128xf32>, vector<8x128xf32> -> vector<8x128xf32>
    %142 = vector.broadcast %130 : vector<1x128xf32> to vector<8x128xf32>
    %143 = arith.addf %141, %142 : vector<8x128xf32>
    %cst_67 = arith.constant 0.000000e+00 : f32
    %144 = vector.broadcast %cst_67 : f32 to vector<8x128xf32>
    %145 = arith.maximumf %143, %144 : vector<8x128xf32>
    %146 = vector.broadcast %133 : vector<1x128xf32> to vector<8x128xf32>
    %147 = arith.mulf %145, %146 : vector<8x128xf32>
    %cst_68 = arith.constant dense<0.000000e+00> : vector<8xf32>
    %148 = vector.multi_reduction <add>, %147, %cst_68 [1] : vector<8x128xf32> to vector<8xf32>
    %149 = vector.broadcast %135 : f32 to vector<8xf32>
    %150 = arith.addf %148, %149 : vector<8xf32>
    %c0_69 = arith.constant 0 : index
    %c0_70 = arith.constant 0 : index
    %c0_71 = arith.constant 0 : index
    %151 = vector.load %arg10[%c0_69, %c0_70, %c0_71] : memref<1x1x8xf32, #tpu.memory_space<vmem>>, vector<1x1x8xf32>
    %152 = vector.shape_cast %151 : vector<1x1x8xf32> to vector<8xf32>
    %153 = vector.shape_cast %150 : vector<8xf32> to vector<1x1x8xf32>
    tpu.vector_store %arg10[%c0_69, %c0_70, %c0_71], %153 {strides = array<i32>} : memref<1x1x8xf32, #tpu.memory_space<vmem>>, vector<1x1x8xf32>,
    return
  }
  func.func @transform_0(%arg0: i32) -> (i32, i32, i32) {
    %c0_i32 = arith.constant 0 : i32
    %c0_i32_0 = arith.constant 0 : i32
    %c0_i32_1 = arith.constant 0 : i32
    return %arg0, %c0_i32, %c0_i32_0 : i32, i32, i32
  }
  func.func @transform_1(%arg0: i32) -> (i32, i32, i32) {
    %c0_i32 = arith.constant 0 : i32
    %c0_i32_0 = arith.constant 0 : i32
    %c0_i32_1 = arith.constant 0 : i32
    return %arg0, %c0_i32, %c0_i32_0 : i32, i32, i32
  }
  func.func @transform_2(%arg0: i32) -> (i32, i32, i32) {
    %c0_i32 = arith.constant 0 : i32
    %c0_i32_0 = arith.constant 0 : i32
    %c0_i32_1 = arith.constant 0 : i32
    return %arg0, %c0_i32, %c0_i32_0 : i32, i32, i32
  }
  func.func @transform_3(%arg0: i32) -> (i32, i32) {
    %c0_i32 = arith.constant 0 : i32
    %c0_i32_0 = arith.constant 0 : i32
    %c0_i32_1 = arith.constant 0 : i32
    return %c0_i32, %c0_i32_0 : i32, i32
  }
  func.func @transform_4(%arg0: i32) -> (i32, i32) {
    %c0_i32 = arith.constant 0 : i32
    %c0_i32_0 = arith.constant 0 : i32
    %c0_i32_1 = arith.constant 0 : i32
    return %c0_i32, %c0_i32_0 : i32, i32
  }
  func.func @transform_5(%arg0: i32) -> (i32, i32) {
    %c0_i32 = arith.constant 0 : i32
    %c0_i32_0 = arith.constant 0 : i32
    %c0_i32_1 = arith.constant 0 : i32
    return %c0_i32, %c0_i32_0 : i32, i32
  }
  func.func @transform_6(%arg0: i32) -> (i32, i32) {
    %c0_i32 = arith.constant 0 : i32
    %c0_i32_0 = arith.constant 0 : i32
    %c0_i32_1 = arith.constant 0 : i32
    return %c0_i32, %c0_i32_0 : i32, i32
  }
  func.func @transform_7(%arg0: i32) -> (i32, i32) {
    %c0_i32 = arith.constant 0 : i32
    %c0_i32_0 = arith.constant 0 : i32
    %c0_i32_1 = arith.constant 0 : i32
    return %c0_i32, %c0_i32_0 : i32, i32
  }
  func.func @transform_8(%arg0: i32) -> i32 {
    %c0_i32 = arith.constant 0 : i32
    %c0_i32_0 = arith.constant 0 : i32
    return %c0_i32 : i32
  }
  func.func @transform_9(%arg0: i32) -> (i32, i32, i32) {
    %c0_i32 = arith.constant 0 : i32
    %c0_i32_0 = arith.constant 0 : i32
    %c0_i32_1 = arith.constant 0 : i32
    return %arg0, %c0_i32, %c0_i32_0 : i32, i32, i32
  }
}

</mosaic_0001>

<llo_original>
// kernel: melu_forward.1
$region0: #{melu_forward.1}
  #allocation0 [shape = 'u32[]', space=smem, size = 0x4, offset = 0x4, fixed_abs, tag = 'smem constant byte address 0x4 - core index']
  #allocation1 [shape = 'u32[144,128]{1,0:T(1,128)}', space=vmem, size = 0x12000, scoped, tag = 'internal scratch']
  #allocation2 [shape = 'f32[1]{0:T(128)S(6)}', space=smem, size = 0x200, scoped, tag = 'scoped memory for melu_forward.1']
  %s0 = inlined_call_operand.vmem [shape: f32[8,8,128], index: 0, kind: input, shape index: {}]
  %s1 = inlined_call_operand.vmem [shape: f32[8,8,1], index: 1, kind: input, shape index: {}]
  %s2 = inlined_call_operand.vmem [shape: f32[8,8,128], index: 2, kind: input, shape index: {}]
  %s3 = inlined_call_operand.vmem [shape: f32[128,128], index: 3, kind: input, shape index: {}]
  %s4 = inlined_call_operand.vmem [shape: f32[1,128], index: 4, kind: input, shape index: {}]
  %s5 = inlined_call_operand.vmem [shape: f32[128,128], index: 5, kind: input, shape index: {}]
  %s6 = inlined_call_operand.vmem [shape: f32[1,128], index: 6, kind: input, shape index: {}]
  %s7 = inlined_call_operand.vmem [shape: f32[1,128], index: 7, kind: input, shape index: {}]
  %s8 = inlined_call_operand.<no memory space> [shape: f32[1], index: 8, kind: input, shape index: {}]
  %s9 = inlined_call_operand.hbm [shape: f32[8,1,8], index: 9, kind: output, shape index: {}]
  %s10 = sld [smem:[#allocation0]]
  $region69: #{melu_forward.1} parent=0
    _
  %s12 = ssub.s32 1, %s10
  %s13 = scalar_select 0, %s12, %s10
  %14 = sst [smem:[#allocation2]] %s8
  $region1: #{melu_forward.1} parent=0
    #allocation3 [shape = 'u8[1024]{0}', space=vmem, size = 0x400, scoped, tag = 'output window, operand 0']
    #allocation4 [shape = 's32[2]{0}', space=sflag, size = 0x8, scoped, tag = 'scoped memory for melu_forward.1']
    %15 = vsyncpa [#allocation4], 0
    %s16 = scalar_lea.sflag [#allocation4], 1
    %17 = vsyncpa %s16, 0
    loop: start=0, step=1, limit=10
    $region2: #{melu_forward.1} parent=1 // loop_pre_header
      _
    $region3: #{melu_forward.1} parent=1 // loop_header
      %s19 = sphi 0, %s23
      %p20 = scmp.ge.s32.totalorder %s19, 10
      %s29 = sphi 0, %s31
      %s32 = sphi 0, %s29
      %s33 = sphi 0, %s32
      %s49 = sphi 0, %s33
      %s55 = sphi 0, %s57
      %s58 = sphi 0, %s55
      %s59 = sphi 0, %s58
      %s75 = sphi 0, %s59
      %s81 = sphi 0, %s83
      %s84 = sphi 0, %s81
      %s85 = sphi 0, %s84
      %s101 = sphi 0, %s85
      %s105 = sphi 0, %s105
      %s107 = sphi 0, %s105
      %s108 = sphi 0, %s107
      %s122 = sphi 0, %s108
      %s126 = sphi 0, %s126
      %s128 = sphi 0, %s126
      %s129 = sphi 0, %s128
      %s143 = sphi 0, %s129
      %s147 = sphi 0, %s147
      %s149 = sphi 0, %s147
      %s150 = sphi 0, %s149
      %s164 = sphi 0, %s150
      %s168 = sphi 0, %s168
      %s170 = sphi 0, %s168
      %s171 = sphi 0, %s170
      %s185 = sphi 0, %s171
      %s189 = sphi 0, %s189
      %s191 = sphi 0, %s189
      %s192 = sphi 0, %s191
      %s206 = sphi 0, %s192
      %s210 = sphi 0, %s210
      %s212 = sphi 0, %s210
      %s213 = sphi 0, %s212
      %s227 = sphi 0, %s213
      %s233 = sphi 0, %s235
      %s236 = sphi 0, %s233
      %s237 = sphi 0, %s236
      %s253 = sphi 0, %s237
    $region4: #{melu_forward.1} parent=1 // loop_header_branch
      %22 = sbr.rel (%p20) target = $region8
    $region5: #{melu_forward.1} parent=1 // loop_body
      %s24 = ssub.s32 %s19, 1
      %s25 = ssub.s32 %s19, 2
      %s26 = sadd.s32 %s19, 1
      %s27 = ssub.s32 %s19, %s26
      %p28 = scmp.eq.s32.totalorder %s27, 0
      %s30 = sadd.s32 %s29, 1
      %s31 = scalar_select %p28, %s29, %s30
      %p34 = pneg %p28
      %p35 = scmp.eq.s32.totalorder %s19, 7
      %p36 = por %p34, %p35
      %p37 = scmp.ne.s32.totalorder %s29, %s32
      %p38 = scmp.eq.s32.totalorder %s19, 0
      %p39 = por %p37, %p38
      %p40 = scmp.ne.s32.totalorder %s29, %s32
      %p41 = scmp.eq.s32.totalorder %s24, 7
      %p42 = por %p40, %p41
      %p43 = scmp.ne.s32.totalorder %s32, %s33
      %p44 = scmp.eq.s32.totalorder %s24, 0
      %p45 = por %p43, %p44
      %p46 = scmp.ne.s32.totalorder %s32, %s33
      %p47 = scmp.eq.s32.totalorder %s25, 7
      %p48 = por %p46, %p47
      %p50 = scmp.ne.s32.totalorder %s33, %s49
      %p51 = scmp.eq.s32.totalorder %s25, 0
      %p52 = por %p50, %p51
      %s53 = ssub.s32 %s19, %s26
      %p54 = scmp.eq.s32.totalorder %s53, 0
      %s56 = sadd.s32 %s55, 1
      %s57 = scalar_select %p54, %s55, %s56
      %p60 = pneg %p54
      %p61 = scmp.eq.s32.totalorder %s19, 7
      %p62 = por %p60, %p61
      %p63 = scmp.ne.s32.totalorder %s55, %s58
      %p64 = scmp.eq.s32.totalorder %s19, 0
      %p65 = por %p63, %p64
      %p66 = scmp.ne.s32.totalorder %s55, %s58
      %p67 = scmp.eq.s32.totalorder %s24, 7
      %p68 = por %p66, %p67
      %p69 = scmp.ne.s32.totalorder %s58, %s59
      %p70 = scmp.eq.s32.totalorder %s24, 0
      %p71 = por %p69, %p70
      %p72 = scmp.ne.s32.totalorder %s58, %s59
      %p73 = scmp.eq.s32.totalorder %s25, 7
      %p74 = por %p72, %p73
      %p76 = scmp.ne.s32.totalorder %s59, %s75
      %p77 = scmp.eq.s32.totalorder %s25, 0
      %p78 = por %p76, %p77
      %s79 = ssub.s32 %s19, %s26
      %p80 = scmp.eq.s32.totalorder %s79, 0
      %s82 = sadd.s32 %s81, 1
      %s83 = scalar_select %p80, %s81, %s82
      %p86 = pneg %p80
      %p87 = scmp.eq.s32.totalorder %s19, 7
      %p88 = por %p86, %p87
      %p89 = scmp.ne.s32.totalorder %s81, %s84
      %p90 = scmp.eq.s32.totalorder %s19, 0
      %p91 = por %p89, %p90
      %p92 = scmp.ne.s32.totalorder %s81, %s84
      %p93 = scmp.eq.s32.totalorder %s24, 7
      %p94 = por %p92, %p93
      %p95 = scmp.ne.s32.totalorder %s84, %s85
      %p96 = scmp.eq.s32.totalorder %s24, 0
      %p97 = por %p95, %p96
      %p98 = scmp.ne.s32.totalorder %s84, %s85
      %p99 = scmp.eq.s32.totalorder %s25, 7
      %p100 = por %p98, %p99
      %p102 = scmp.ne.s32.totalorder %s85, %s101
      %p103 = scmp.eq.s32.totalorder %s25, 0
      %p104 = por %p102, %p103
      %s106 = sadd.s32 %s105, 1
      %p109 = scmp.eq.s32.totalorder %s19, 7
      %p110 = scmp.ne.s32.totalorder %s105, %s107
      %p111 = scmp.eq.s32.totalorder %s19, 0
      %p112 = por %p110, %p111
      %p113 = scmp.ne.s32.totalorder %s105, %s107
      %p114 = scmp.eq.s32.totalorder %s24, 7
      %p115 = por %p113, %p114
      %p116 = scmp.ne.s32.totalorder %s107, %s108
      %p117 = scmp.eq.s32.totalorder %s24, 0
      %p118 = por %p116, %p117
      %p119 = scmp.ne.s32.totalorder %s107, %s108
      %p120 = scmp.eq.s32.totalorder %s25, 7
      %p121 = por %p119, %p120
      %p123 = scmp.ne.s32.totalorder %s108, %s122
      %p124 = scmp.eq.s32.totalorder %s25, 0
      %p125 = por %p123, %p124
      %s127 = sadd.s32 %s126, 1
      %p130 = scmp.eq.s32.totalorder %s19, 7
      %p131 = scmp.ne.s32.totalorder %s126, %s128
      %p132 = scmp.eq.s32.totalorder %s19, 0
      %p133 = por %p131, %p132
      %p134 = scmp.ne.s32.totalorder %s126, %s128
      %p135 = scmp.eq.s32.totalorder %s24, 7
      %p136 = por %p134, %p135
      %p137 = scmp.ne.s32.totalorder %s128, %s129
      %p138 = scmp.eq.s32.totalorder %s24, 0
      %p139 = por %p137, %p138
      %p140 = scmp.ne.s32.totalorder %s128, %s129
      %p141 = scmp.eq.s32.totalorder %s25, 7
      %p142 = por %p140, %p141
      %p144 = scmp.ne.s32.totalorder %s129, %s143
      %p145 = scmp.eq.s32.totalorder %s25, 0
      %p146 = por %p144, %p145
      %s148 = sadd.s32 %s147, 1
      %p151 = scmp.eq.s32.totalorder %s19, 7
      %p152 = scmp.ne.s32.totalorder %s147, %s149
      %p153 = scmp.eq.s32.totalorder %s19, 0
      %p154 = por %p152, %p153
      %p155 = scmp.ne.s32.totalorder %s147, %s149
      %p156 = scmp.eq.s32.totalorder %s24, 7
      %p157 = por %p155, %p156
      %p158 = scmp.ne.s32.totalorder %s149, %s150
      %p159 = scmp.eq.s32.totalorder %s24, 0
      %p160 = por %p158, %p159
      %p161 = scmp.ne.s32.totalorder %s149, %s150
      %p162 = scmp.eq.s32.totalorder %s25, 7
      %p163 = por %p161, %p162
      %p165 = scmp.ne.s32.totalorder %s150, %s164
      %p166 = scmp.eq.s32.totalorder %s25, 0
      %p167 = por %p165, %p166
      %s169 = sadd.s32 %s168, 1
      %p172 = scmp.eq.s32.totalorder %s19, 7
      %p173 = scmp.ne.s32.totalorder %s168, %s170
      %p174 = scmp.eq.s32.totalorder %s19, 0
      %p175 = por %p173, %p174
      %p176 = scmp.ne.s32.totalorder %s168, %s170
      %p177 = scmp.eq.s32.totalorder %s24, 7
      %p178 = por %p176, %p177
      %p179 = scmp.ne.s32.totalorder %s170, %s171
      %p180 = scmp.eq.s32.totalorder %s24, 0
      %p181 = por %p179, %p180
      %p182 = scmp.ne.s32.totalorder %s170, %s171
      %p183 = scmp.eq.s32.totalorder %s25, 7
      %p184 = por %p182, %p183
      %p186 = scmp.ne.s32.totalorder %s171, %s185
      %p187 = scmp.eq.s32.totalorder %s25, 0
      %p188 = por %p186, %p187
      %s190 = sadd.s32 %s189, 1
      %p193 = scmp.eq.s32.totalorder %s19, 7
      %p194 = scmp.ne.s32.totalorder %s189, %s191
      %p195 = scmp.eq.s32.totalorder %s19, 0
      %p196 = por %p194, %p195
      %p197 = scmp.ne.s32.totalorder %s189, %s191
      %p198 = scmp.eq.s32.totalorder %s24, 7
      %p199 = por %p197, %p198
      %p200 = scmp.ne.s32.totalorder %s191, %s192
      %p201 = scmp.eq.s32.totalorder %s24, 0
      %p202 = por %p200, %p201
      %p203 = scmp.ne.s32.totalorder %s191, %s192
      %p204 = scmp.eq.s32.totalorder %s25, 7
      %p205 = por %p203, %p204
      %p207 = scmp.ne.s32.totalorder %s192, %s206
      %p208 = scmp.eq.s32.totalorder %s25, 0
      %p209 = por %p207, %p208
      %s211 = sadd.s32 %s210, 1
      %p214 = scmp.eq.s32.totalorder %s19, 7
      %p215 = scmp.ne.s32.totalorder %s210, %s212
      %p216 = scmp.eq.s32.totalorder %s19, 0
      %p217 = por %p215, %p216
      %p218 = scmp.ne.s32.totalorder %s210, %s212
      %p219 = scmp.eq.s32.totalorder %s24, 7
      %p220 = por %p218, %p219
      %p221 = scmp.ne.s32.totalorder %s212, %s213
      %p222 = scmp.eq.s32.totalorder %s24, 0
      %p223 = por %p221, %p222
      %p224 = scmp.ne.s32.totalorder %s212, %s213
      %p225 = scmp.eq.s32.totalorder %s25, 7
      %p226 = por %p224, %p225
      %p228 = scmp.ne.s32.totalorder %s213, %s227
      %p229 = scmp.eq.s32.totalorder %s25, 0
      %p230 = por %p228, %p229
      %s231 = ssub.s32 %s19, %s26
      %p232 = scmp.eq.s32.totalorder %s231, 0
      %s234 = sadd.s32 %s233, 1
      %s235 = scalar_select %p232, %s233, %s234
      %p238 = pneg %p232
      %p239 = scmp.eq.s32.totalorder %s19, 7
      %p240 = por %p238, %p239
      %p241 = scmp.ne.s32.totalorder %s233, %s236
      %p242 = scmp.eq.s32.totalorder %s19, 0
      %p243 = por %p241, %p242
      %p244 = scmp.ne.s32.totalorder %s233, %s236
      %p245 = scmp.eq.s32.totalorder %s24, 7
      %p246 = por %p244, %p245
      %p247 = scmp.ne.s32.totalorder %s236, %s237
      %p248 = scmp.eq.s32.totalorder %s24, 0
      %p249 = por %p247, %p248
      %p250 = scmp.ne.s32.totalorder %s236, %s237
      %p251 = scmp.eq.s32.totalorder %s25, 7
      %p252 = por %p250, %p251
      %p254 = scmp.ne.s32.totalorder %s237, %s253
      %p255 = scmp.eq.s32.totalorder %s25, 0
      %p256 = por %p254, %p255
      %p257 = scmp.le.s32.totalorder 1, %s19
      %p258 = scmp.lt.s32.totalorder %s19, 9
      %p259 = pnand %p257, %p258
      %p260 = pneg %p259
      // Predicated region
      $region9: #{melu_forward.1} parent=5 // pred_check
        _
      $region10: #{melu_forward.1} parent=5 // pred_check_branch
        %262 = sbr.rel (%p259) target = $region12
      $region11: #{melu_forward.1} parent=5 // pred_region
        %s263 = ssub.s32 %s19, 1
        // Predicated region
        $region13: #{melu_forward.1} parent=11 // pred_check
          %p264 = pneg %p118
        $region14: #{melu_forward.1} parent=11 // pred_check_branch
          %266 = sbr.rel (%p264) target = $region16
        $region15: #{melu_forward.1} parent=11 // pred_region
          _
        $region16: #{melu_forward.1} parent=11 // pred_fallthru
          _
        // Predicated region
        $region17: #{melu_forward.1} parent=11 // pred_check
          %p267 = pneg %p139
        $region18: #{melu_forward.1} parent=11 // pred_check_branch
          %269 = sbr.rel (%p267) target = $region20
        $region19: #{melu_forward.1} parent=11 // pred_region
          _
        $region20: #{melu_forward.1} parent=11 // pred_fallthru
          _
        // Predicated region
        $region21: #{melu_forward.1} parent=11 // pred_check
          %p270 = pneg %p160
        $region22: #{melu_forward.1} parent=11 // pred_check_branch
          %272 = sbr.rel (%p270) target = $region24
        $region23: #{melu_forward.1} parent=11 // pred_region
          _
        $region24: #{melu_forward.1} parent=11 // pred_fallthru
          _
        // Predicated region
        $region25: #{melu_forward.1} parent=11 // pred_check
          %p273 = pneg %p181
        $region26: #{melu_forward.1} parent=11 // pred_check_branch
          %275 = sbr.rel (%p273) target = $region28
        $region27: #{melu_forward.1} parent=11 // pred_region
          _
        $region28: #{melu_forward.1} parent=11 // pred_fallthru
          _
        // Predicated region
        $region29: #{melu_forward.1} parent=11 // pred_check
          %p276 = pneg %p202
        $region30: #{melu_forward.1} parent=11 // pred_check_branch
          %278 = sbr.rel (%p276) target = $region32
        $region31: #{melu_forward.1} parent=11 // pred_region
          _
        $region32: #{melu_forward.1} parent=11 // pred_fallthru
          _
        // Predicated region
        $region33: #{melu_forward.1} parent=11 // pred_check
          %p279 = pneg %p223
        $region34: #{melu_forward.1} parent=11 // pred_check_branch
          %281 = sbr.rel (%p279) target = $region36
        $region35: #{melu_forward.1} parent=11 // pred_region
          _
        $region36: #{melu_forward.1} parent=11 // pred_fallthru
          _
      $region12: #{melu_forward.1} parent=5 // pred_fallthru
        _
      %p282 = scmp.lt.s32.totalorder %s19, 8
      // Predicated region
      $region37: #{melu_forward.1} parent=5 // pred_check
        %p283 = pneg %p282
      $region38: #{melu_forward.1} parent=5 // pred_check_branch
        %285 = sbr.rel (%p283) target = $region40
      $region39: #{melu_forward.1} parent=5 // pred_region
        // Predicated region
        $region41: #{melu_forward.1} parent=39 // pred_check
          %p286 = pneg %p39
        $region42: #{melu_forward.1} parent=39 // pred_check_branch
          %288 = sbr.rel (%p286) target = $region44
        $region43: #{melu_forward.1} parent=39 // pred_region
          %p289 = scmp.lt.s32.totalorder %s19, 7
          %s290 = scalar_select %p289, %s19, 7
          %s291 = smul.addr %s290, 8
          %s292 = scalar_lea.vmem %s0, %s291
        $region44: #{melu_forward.1} parent=39 // pred_fallthru
          _
        // Predicated region
        $region45: #{melu_forward.1} parent=39 // pred_check
          %p293 = pneg %p65
        $region46: #{melu_forward.1} parent=39 // pred_check_branch
          %295 = sbr.rel (%p293) target = $region48
        $region47: #{melu_forward.1} parent=39 // pred_region
          %p296 = scmp.lt.s32.totalorder %s19, 7
          %s297 = scalar_select %p296, %s19, 7
          %s298 = smul.addr %s297, 8
          %s299 = scalar_lea.vmem %s1, %s298
        $region48: #{melu_forward.1} parent=39 // pred_fallthru
          _
        // Predicated region
        $region49: #{melu_forward.1} parent=39 // pred_check
          %p300 = pneg %p91
        $region50: #{melu_forward.1} parent=39 // pred_check_branch
          %302 = sbr.rel (%p300) target = $region52
        $region51: #{melu_forward.1} parent=39 // pred_region
          %p303 = scmp.lt.s32.totalorder %s19, 7
          %s304 = scalar_select %p303, %s19, 7
          %s305 = smul.addr %s304, 8
          %s306 = scalar_lea.vmem %s2, %s305
        $region52: #{melu_forward.1} parent=39 // pred_fallthru
          _
      $region40: #{melu_forward.1} parent=5 // pred_fallthru
        _
      %p307 = scmp.le.s32.totalorder 1, %s19
      %p308 = scmp.lt.s32.totalorder %s19, 9
      %p309 = pnand %p307, %p308
      %p310 = pneg %p309
      // Predicated region
      $region53: #{melu_forward.1} parent=5 // pred_check
        _
      $region54: #{melu_forward.1} parent=5 // pred_check_branch
        %312 = sbr.rel (%p309) target = $region56
      $region55: #{melu_forward.1} parent=5 // pred_region
        %s313 = ssub.s32 %s19, 1
        %p314 = scmp.lt.s32.totalorder %s24, 7
        %s315 = scalar_select %p314, %s24, 7
        %s316 = smul.addr %s315, 8
        %s317 = scalar_lea.vmem %s0, %s316
        %p318 = pneg %p45
        %p319 = pneg %p42
        %p320 = scmp.lt.s32.totalorder %s24, 7
        %s321 = scalar_select %p320, %s24, 7
        %s322 = smul.addr %s321, 8
        %s323 = scalar_lea.vmem %s1, %s322
        %p324 = pneg %p71
        %p325 = pneg %p68
        %p326 = scmp.lt.s32.totalorder %s24, 7
        %s327 = scalar_select %p326, %s24, 7
        %s328 = smul.addr %s327, 8
        %s329 = scalar_lea.vmem %s2, %s328
        %p330 = pneg %p97
        %p331 = pneg %p94
        %p332 = pneg %p118
        %p333 = pneg %p115
        %p334 = pneg %p139
        %p335 = pneg %p136
        %p336 = pneg %p160
        %p337 = pneg %p157
        %p338 = pneg %p181
        %p339 = pneg %p178
        %p340 = pneg %p202
        %p341 = pneg %p199
        %p342 = pneg %p223
        %p343 = pneg %p220
        %p344 = pneg %p249
        %p345 = pneg %p246
        %s346 = sand.u32 %s236, 1
        %s347 = scalar_lea.sflag [#allocation4], %s346
        %s348 = sand.u32 %s236, 1
        %s349 = scalar_lea.vmem [#allocation3], %s348
        %p350 = scmp.lt.s32.totalorder %s24, 7
        %s351 = scalar_select %p350, %s24, 7
        %s352 = smul.addr %s351, 8
        %s353 = scalar_lea.vmem %s0, %s352
        %p354 = scmp.lt.s32.totalorder %s24, 7
        %s355 = scalar_select %p354, %s24, 7
        %s356 = smul.addr %s355, 8
        %s357 = scalar_lea.vmem %s1, %s356
        %p358 = scmp.lt.s32.totalorder %s24, 7
        %s359 = scalar_select %p358, %s24, 7
        %s360 = smul.addr %s359, 8
        %s361 = scalar_lea.vmem %s2, %s360
        %v362 = vld [vmem:[%s353] sm:$0xff]
        %v363 = vld [vmem:[%s357] sm:$0xff]
        %v364 = vld [vmem:[%s361] sm:$0xff]
        %v365 = vld [vmem:[%s3] sm:$0xff]
        %v366 = vld [vmem:[%s3 + $0x8] sm:$0xff]
        %v367 = vld [vmem:[%s3 + $0x10] sm:$0xff]
        %v368 = vld [vmem:[%s3 + $0x18] sm:$0xff]
        %v369 = vld [vmem:[%s3 + $0x20] sm:$0xff]
        %v370 = vld [vmem:[%s3 + $0x28] sm:$0xff]
        %v371 = vld [vmem:[%s3 + $0x30] sm:$0xff]
        %v372 = vld [vmem:[%s3 + $0x38] sm:$0xff]
        %v373 = vld [vmem:[%s3 + $0x40] sm:$0xff]
        %v374 = vld [vmem:[%s3 + $0x48] sm:$0xff]
        %v375 = vld [vmem:[%s3 + $0x50] sm:$0xff]
        %v376 = vld [vmem:[%s3 + $0x58] sm:$0xff]
        %v377 = vld [vmem:[%s3 + $0x60] sm:$0xff]
        %v378 = vld [vmem:[%s3 + $0x68] sm:$0xff]
        %v379 = vld [vmem:[%s3 + $0x70] sm:$0xff]
        %v380 = vld [vmem:[%s3 + $0x78] sm:$0xff]
        %v381 = vld [vmem:[%s4] sm:$0x1]
        %v382 = vld [vmem:[%s5] sm:$0xff]
        %v383 = vld [vmem:[%s5 + $0x8] sm:$0xff]
        %v384 = vld [vmem:[%s5 + $0x10] sm:$0xff]
        %v385 = vld [vmem:[%s5 + $0x18] sm:$0xff]
        %v386 = vld [vmem:[%s5 + $0x20] sm:$0xff]
        %v387 = vld [vmem:[%s5 + $0x28] sm:$0xff]
        %v388 = vld [vmem:[%s5 + $0x30] sm:$0xff]
        %v389 = vld [vmem:[%s5 + $0x38] sm:$0xff]
        %v390 = vld [vmem:[%s5 + $0x40] sm:$0xff]
        %v391 = vld [vmem:[%s5 + $0x48] sm:$0xff]
        %v392 = vld [vmem:[%s5 + $0x50] sm:$0xff]
        %v393 = vld [vmem:[%s5 + $0x58] sm:$0xff]
        %v394 = vld [vmem:[%s5 + $0x60] sm:$0xff]
        %v395 = vld [vmem:[%s5 + $0x68] sm:$0xff]
        %v396 = vld [vmem:[%s5 + $0x70] sm:$0xff]
        %v397 = vld [vmem:[%s5 + $0x78] sm:$0xff]
        %v398 = vld [vmem:[%s6] sm:$0x1]
        %v399 = vld [vmem:[%s7] sm:$0x1]
        %s400 = sld [smem:[#allocation2]]
        %v402 = vlaneseq
        %v403 = vshrl.u32 %v402, 7
        %v404 = vsub.s32 0, %v403
        %v405 = vrot.slane %v381, %v404
        %407 = vmatprep.subr.mxu0 0.0
        %408 = vmatpush1.xpose.msra.mxu0 %v380
        %409 = vmatprep.subr.mxu0 0.0
        %410 = vmatpush1.xpose.msra.mxu0 %v379
        %411 = vmatprep.subr.mxu0 0.0
        %412 = vmatpush1.xpose.msra.mxu0 %v378
        %413 = vmatprep.subr.mxu0 0.0
        %414 = vmatpush1.xpose.msra.mxu0 %v377
        %415 = vmatprep.subr.mxu0 0.0
        %416 = vmatpush1.xpose.msra.mxu0 %v376
        %417 = vmatprep.subr.mxu0 0.0
        %418 = vmatpush1.xpose.msra.mxu0 %v375
        %419 = vmatprep.subr.mxu0 0.0
        %420 = vmatpush1.xpose.msra.mxu0 %v374
        %421 = vmatprep.subr.mxu0 0.0
        %422 = vmatpush1.xpose.msra.mxu0 %v373
        %423 = vmatprep.subr.mxu0 0.0
        %424 = vmatpush1.xpose.msra.mxu0 %v372
        %425 = vmatprep.subr.mxu0 0.0
        %426 = vmatpush1.xpose.msra.mxu0 %v371
        %427 = vmatprep.subr.mxu0 0.0
        %428 = vmatpush1.xpose.msra.mxu0 %v370
        %429 = vmatprep.subr.mxu0 0.0
        %430 = vmatpush1.xpose.msra.mxu0 %v369
        %431 = vmatprep.subr.mxu0 0.0
        %432 = vmatpush1.xpose.msra.mxu0 %v368
        %433 = vmatprep.subr.mxu0 0.0
        %434 = vmatpush1.xpose.msra.mxu0 %v367
        %435 = vmatprep.subr.mxu0 0.0
        %436 = vmatpush1.xpose.msra.mxu0 %v366
        %437 = vmatprep.subr.mxu0 0.0
        %438 = vmatpush1.xpose.msra.mxu0 %v365
        %439 = vmatprep.subr.mxu0 0.0
        %440 = vmatpush2.xpose.msra.mxu0 0.0
        %441 = vmatprep.subr.mxu0 0.0
        %442 = vmatpush2.xpose.msra.mxu0 0.0
        %443 = vmatprep.subr.mxu0 0.0
        %444 = vmatpush2.xpose.msra.mxu0 0.0
        %445 = vmatprep.subr.mxu0 0.0
        %446 = vmatpush2.xpose.msra.mxu0 0.0
        %447 = vmatprep.subr.mxu0 0.0
        %448 = vmatpush2.xpose.msra.mxu0 0.0
        %449 = vmatprep.subr.mxu0 0.0
        %450 = vmatpush2.xpose.msra.mxu0 0.0
        %451 = vmatprep.subr.mxu0 0.0
        %452 = vmatpush2.xpose.msra.mxu0 0.0
        %453 = vmatprep.subr.mxu0 0.0
        %454 = vmatpush2.xpose.msra.mxu0 0.0
        %455 = vmatprep.subr.mxu0 0.0
        %456 = vmatpush2.xpose.msra.mxu0 0.0
        %457 = vmatprep.subr.mxu0 0.0
        %458 = vmatpush2.xpose.msra.mxu0 0.0
        %459 = vmatprep.subr.mxu0 0.0
        %460 = vmatpush2.xpose.msra.mxu0 0.0
        %461 = vmatprep.subr.mxu0 0.0
        %462 = vmatpush2.xpose.msra.mxu0 0.0
        %463 = vmatprep.subr.mxu0 0.0
        %464 = vmatpush2.xpose.msra.mxu0 0.0
        %465 = vmatprep.subr.mxu0 0.0
        %466 = vmatpush2.xpose.msra.mxu0 0.0
        %467 = vmatprep.subr.mxu0 0.0
        %468 = vmatpush2.xpose.msra.mxu0 0.0
        %469 = vmatprep.subr.mxu0 0.0
        %470 = vmatpush2.xpose.msra.mxu0 0.0
        %471 = vmatprep.mubr.f32.mxu0 0.0
        %472 = vmatmul.mubr.f32.gmra.mxu0 %v362
        %v473 = vpop.f32.mrf.mxu0
        %v474 = vadd.f32 %v405, %v473
        %v475 = vpop.f32.mrf.mxu0
        %476 = vdwg.mxu0
        %v477 = vmax.f32 %v474, 0.0
        %v479 = vlaneseq
        %v480 = vshrl.u32 %v479, 7
        %v481 = vsub.s32 0, %v480
        %v482 = vrot.slane %v398, %v481
        %484 = vmatprep.subr.mxu0 0.0
        %485 = vmatpush1.xpose.msra.mxu0 %v397
        %486 = vmatprep.subr.mxu0 0.0
        %487 = vmatpush1.xpose.msra.mxu0 %v396
        %488 = vmatprep.subr.mxu0 0.0
        %489 = vmatpush1.xpose.msra.mxu0 %v395
        %490 = vmatprep.subr.mxu0 0.0
        %491 = vmatpush1.xpose.msra.mxu0 %v394
        %492 = vmatprep.subr.mxu0 0.0
        %493 = vmatpush1.xpose.msra.mxu0 %v393
        %494 = vmatprep.subr.mxu0 0.0
        %495 = vmatpush1.xpose.msra.mxu0 %v392
        %496 = vmatprep.subr.mxu0 0.0
        %497 = vmatpush1.xpose.msra.mxu0 %v391
        %498 = vmatprep.subr.mxu0 0.0
        %499 = vmatpush1.xpose.msra.mxu0 %v390
        %500 = vmatprep.subr.mxu0 0.0
        %501 = vmatpush1.xpose.msra.mxu0 %v389
        %502 = vmatprep.subr.mxu0 0.0
        %503 = vmatpush1.xpose.msra.mxu0 %v388
        %504 = vmatprep.subr.mxu0 0.0
        %505 = vmatpush1.xpose.msra.mxu0 %v387
        %506 = vmatprep.subr.mxu0 0.0
        %507 = vmatpush1.xpose.msra.mxu0 %v386
        %508 = vmatprep.subr.mxu0 0.0
        %509 = vmatpush1.xpose.msra.mxu0 %v385
        %510 = vmatprep.subr.mxu0 0.0
        %511 = vmatpush1.xpose.msra.mxu0 %v384
        %512 = vmatprep.subr.mxu0 0.0
        %513 = vmatpush1.xpose.msra.mxu0 %v383
        %514 = vmatprep.subr.mxu0 0.0
        %515 = vmatpush1.xpose.msra.mxu0 %v382
        %516 = vmatprep.subr.mxu0 0.0
        %517 = vmatpush2.xpose.msra.mxu0 0.0
        %518 = vmatprep.subr.mxu0 0.0
        %519 = vmatpush2.xpose.msra.mxu0 0.0
        %520 = vmatprep.subr.mxu0 0.0
        %521 = vmatpush2.xpose.msra.mxu0 0.0
        %522 = vmatprep.subr.mxu0 0.0
        %523 = vmatpush2.xpose.msra.mxu0 0.0
        %524 = vmatprep.subr.mxu0 0.0
        %525 = vmatpush2.xpose.msra.mxu0 0.0
        %526 = vmatprep.subr.mxu0 0.0
        %527 = vmatpush2.xpose.msra.mxu0 0.0
        %528 = vmatprep.subr.mxu0 0.0
        %529 = vmatpush2.xpose.msra.mxu0 0.0
        %530 = vmatprep.subr.mxu0 0.0
        %531 = vmatpush2.xpose.msra.mxu0 0.0
        %532 = vmatprep.subr.mxu0 0.0
        %533 = vmatpush2.xpose.msra.mxu0 0.0
        %534 = vmatprep.subr.mxu0 0.0
        %535 = vmatpush2.xpose.msra.mxu0 0.0
        %536 = vmatprep.subr.mxu0 0.0
        %537 = vmatpush2.xpose.msra.mxu0 0.0
        %538 = vmatprep.subr.mxu0 0.0
        %539 = vmatpush2.xpose.msra.mxu0 0.0
        %540 = vmatprep.subr.mxu0 0.0
        %541 = vmatpush2.xpose.msra.mxu0 0.0
        %542 = vmatprep.subr.mxu0 0.0
        %543 = vmatpush2.xpose.msra.mxu0 0.0
        %544 = vmatprep.subr.mxu0 0.0
        %545 = vmatpush2.xpose.msra.mxu0 0.0
        %546 = vmatprep.subr.mxu0 0.0
        %547 = vmatpush2.xpose.msra.mxu0 0.0
        %548 = vmatprep.mubr.f32.mxu0 0.0
        %549 = vmatmul.mubr.f32.gmra.mxu0 %v477
        %v550 = vpop.f32.mrf.mxu0
        %v551 = vadd.f32 %v482, %v550
        %v552 = vpop.f32.mrf.mxu0
        %553 = vdwg.mxu0
        %v554 = vmax.f32 %v551, 0.0
        %v556 = vlaneseq
        %v557 = vshrl.u32 %v556, 7
        %v558 = vsub.s32 0, %v557
        %v559 = vrot.slane %v399, %v558
        %v561 = vmul.f32 %v554, %v559
        %562 = vadd.xlane.f32.xlu0 %v561
        %v563 = vpop.xlane.xlu0 %562
        %v564 = vstv %s400
        %v565 = vadd.f32 %v563, %v564
        %v566 = vsub.f32 %v565, %v363
        %v567 = vmul.f32 %v566, 0.25
        %569 = vset.pattern.permute.xlu0 0
        %570 = vperm.xlu0 %569, %v567
        %v571 = vpop.permute.xlu0 %570
        %v573 = vmul.f32 %v571, %v554
        %v574 = vrot.slane %v573, 4
        %v575 = vadd.f32 %v573, %v574
        %v576 = vrot.slane %v575, 2
        %v577 = vadd.f32 %v575, %v576
        %v578 = vrot.slane %v577, 1
        %v579 = vadd.f32 %v577, %v578
        %vm580 = vcmask 7168
        %v581 = vsel %vm580, %v567, 0.0
        %582 = vadd.xlane.f32.xlu0 %v581
        %v583 = vpop.xlane.xlu0 %582
        %v584 = vrot.slane %v583, 4
        %v585 = vadd.f32 %v583, %v584
        %v586 = vrot.slane %v585, 2
        %v587 = vadd.f32 %v585, %v586
        %v588 = vrot.slane %v587, 1
        %v589 = vadd.f32 %v587, %v588
        %s590 = vtos %v589
        %v591 = vmul.f32 %v571, %v559
        %vm592 = vcmp.gt.f32.partialorder %v551, 0.0
        %v593 = vsel %vm592, %v591, 0.0
        %594 = vxpose.xlu0.b32.start [1/16] %v593, 128
        %595 = vxpose.xlu0.b32.cont [2/16] 0.0, 128
        %596 = vxpose.xlu0.b32.cont [3/16] 0.0, 128
        %597 = vxpose.xlu0.b32.cont [4/16] 0.0, 128
        %598 = vxpose.xlu0.b32.cont [5/16] 0.0, 128
        %599 = vxpose.xlu0.b32.cont [6/16] 0.0, 128
        %600 = vxpose.xlu0.b32.cont [7/16] 0.0, 128
        %601 = vxpose.xlu0.b32.cont [8/16] 0.0, 128
        %602 = vxpose.xlu0.b32.cont [9/16] 0.0, 128
        %603 = vxpose.xlu0.b32.cont [10/16] 0.0, 128
        %604 = vxpose.xlu0.b32.cont [11/16] 0.0, 128
        %605 = vxpose.xlu0.b32.cont [12/16] 0.0, 128
        %606 = vxpose.xlu0.b32.cont [13/16] 0.0, 128
        %607 = vxpose.xlu0.b32.cont [14/16] 0.0, 128
        %608 = vxpose.xlu0.b32.cont [15/16] 0.0, 128
        %609 = vxpose.xlu0.b32.end [16/16] 0.0, 128
        %v610 = vpop.trf.xlu0
        %v611 = vpop.trf.xlu0
        %v612 = vpop.trf.xlu0
        %v613 = vpop.trf.xlu0
        %v614 = vpop.trf.xlu0
        %v615 = vpop.trf.xlu0
        %v616 = vpop.trf.xlu0
        %v617 = vpop.trf.xlu0
        %v618 = vpop.trf.xlu0
        %v619 = vpop.trf.xlu0
        %v620 = vpop.trf.xlu0
        %v621 = vpop.trf.xlu0
        %v622 = vpop.trf.xlu0
        %v623 = vpop.trf.xlu0
        %v624 = vpop.trf.xlu0
        %v625 = vpop.trf.xlu0
        %vm626 = vcmask 64512
        %v628 = vsel %vm626, %v610, 0
        %v631 = vsel %vm626, %v611, 0
        %v634 = vsel %vm626, %v612, 0
        %v637 = vsel %vm626, %v613, 0
        %v640 = vsel %vm626, %v614, 0
        %v643 = vsel %vm626, %v615, 0
        %v646 = vsel %vm626, %v616, 0
        %v649 = vsel %vm626, %v617, 0
        %v652 = vsel %vm626, %v618, 0
        %v655 = vsel %vm626, %v619, 0
        %v658 = vsel %vm626, %v620, 0
        %v661 = vsel %vm626, %v621, 0
        %v664 = vsel %vm626, %v622, 0
        %v667 = vsel %vm626, %v623, 0
        %v670 = vsel %vm626, %v624, 0
        %v673 = vsel %vm626, %v625, 0
        %675 = vmatprep.subr.mxu0 0.0
        %676 = vmatpush1.msra.mxu0 0.0
        %677 = vmatprep.subr.mxu0 0.0
        %678 = vmatpush1.msra.mxu0 0.0
        %679 = vmatprep.subr.mxu0 0.0
        %680 = vmatpush1.msra.mxu0 0.0
        %681 = vmatprep.subr.mxu0 0.0
        %682 = vmatpush1.msra.mxu0 0.0
        %683 = vmatprep.subr.mxu0 0.0
        %684 = vmatpush1.msra.mxu0 0.0
        %685 = vmatprep.subr.mxu0 0.0
        %686 = vmatpush1.msra.mxu0 0.0
        %687 = vmatprep.subr.mxu0 0.0
        %688 = vmatpush1.msra.mxu0 0.0
        %689 = vmatprep.subr.mxu0 0.0
        %690 = vmatpush1.msra.mxu0 0.0
        %691 = vmatprep.subr.mxu0 0.0
        %692 = vmatpush1.msra.mxu0 0.0
        %693 = vmatprep.subr.mxu0 0.0
        %694 = vmatpush1.msra.mxu0 0.0
        %695 = vmatprep.subr.mxu0 0.0
        %696 = vmatpush1.msra.mxu0 0.0
        %697 = vmatprep.subr.mxu0 0.0
        %698 = vmatpush1.msra.mxu0 0.0
        %699 = vmatprep.subr.mxu0 0.0
        %700 = vmatpush1.msra.mxu0 0.0
        %701 = vmatprep.subr.mxu0 0.0
        %702 = vmatpush1.msra.mxu0 0.0
        %703 = vmatprep.subr.mxu0 0.0
        %704 = vmatpush1.msra.mxu0 0.0
        %705 = vmatprep.subr.mxu0 0.0
        %706 = vmatpush1.msra.mxu0 %v477
        %707 = vmatprep.subr.mxu0 0.0
        %708 = vmatpush2.msra.mxu0 0.0
        %709 = vmatprep.subr.mxu0 0.0
        %710 = vmatpush2.msra.mxu0 0.0
        %711 = vmatprep.subr.mxu0 0.0
        %712 = vmatpush2.msra.mxu0 0.0
        %713 = vmatprep.subr.mxu0 0.0
        %714 = vmatpush2.msra.mxu0 0.0
        %715 = vmatprep.subr.mxu0 0.0
        %716 = vmatpush2.msra.mxu0 0.0
        %717 = vmatprep.subr.mxu0 0.0
        %718 = vmatpush2.msra.mxu0 0.0
        %719 = vmatprep.subr.mxu0 0.0
        %720 = vmatpush2.msra.mxu0 0.0
        %721 = vmatprep.subr.mxu0 0.0
        %722 = vmatpush2.msra.mxu0 0.0
        %723 = vmatprep.subr.mxu0 0.0
        %724 = vmatpush2.msra.mxu0 0.0
        %725 = vmatprep.subr.mxu0 0.0
        %726 = vmatpush2.msra.mxu0 0.0
        %727 = vmatprep.subr.mxu0 0.0
        %728 = vmatpush2.msra.mxu0 0.0
        %729 = vmatprep.subr.mxu0 0.0
        %730 = vmatpush2.msra.mxu0 0.0
        %731 = vmatprep.subr.mxu0 0.0
        %732 = vmatpush2.msra.mxu0 0.0
        %733 = vmatprep.subr.mxu0 0.0
        %734 = vmatpush2.msra.mxu0 0.0
        %735 = vmatprep.subr.mxu0 0.0
        %736 = vmatpush2.msra.mxu0 0.0
        %737 = vmatprep.subr.mxu0 0.0
        %738 = vmatpush2.msra.mxu0 0.0
        %739 = vmatprep.mubr.f32.mxu0 0.0
        %740 = vmatmul.mubr.f32.gmra.mxu0 %v628
        %v741 = vpop.f32.mrf.mxu0
        %v742 = vadd.f32 0.0, %v741
        %v743 = vpop.f32.mrf.mxu0
        %744 = vmatprep.mubr.f32.mxu0 0.0
        %745 = vmatmul.mubr.f32.gmra.mxu0 %v631
        %v746 = vpop.f32.mrf.mxu0
        %v747 = vadd.f32 0.0, %v746
        %v748 = vpop.f32.mrf.mxu0
        %749 = vmatprep.mubr.f32.mxu0 0.0
        %750 = vmatmul.mubr.f32.gmra.mxu0 %v634
        %v751 = vpop.f32.mrf.mxu0
        %v752 = vadd.f32 0.0, %v751
        %v753 = vpop.f32.mrf.mxu0
        %754 = vmatprep.mubr.f32.mxu0 0.0
        %755 = vmatmul.mubr.f32.gmra.mxu0 %v637
        %v756 = vpop.f32.mrf.mxu0
        %v757 = vadd.f32 0.0, %v756
        %v758 = vpop.f32.mrf.mxu0
        %759 = vmatprep.mubr.f32.mxu0 0.0
        %760 = vmatmul.mubr.f32.gmra.mxu0 %v640
        %v761 = vpop.f32.mrf.mxu0
        %v762 = vadd.f32 0.0, %v761
        %v763 = vpop.f32.mrf.mxu0
        %764 = vmatprep.mubr.f32.mxu0 0.0
        %765 = vmatmul.mubr.f32.gmra.mxu0 %v643
        %v766 = vpop.f32.mrf.mxu0
        %v767 = vadd.f32 0.0, %v766
        %v768 = vpop.f32.mrf.mxu0
        %769 = vmatprep.mubr.f32.mxu0 0.0
        %770 = vmatmul.mubr.f32.gmra.mxu0 %v646
        %v771 = vpop.f32.mrf.mxu0
        %v772 = vadd.f32 0.0, %v771
        %v773 = vpop.f32.mrf.mxu0
        %774 = vmatprep.mubr.f32.mxu0 0.0
        %775 = vmatmul.mubr.f32.gmra.mxu0 %v649
        %v776 = vpop.f32.mrf.mxu0
        %v777 = vadd.f32 0.0, %v776
        %v778 = vpop.f32.mrf.mxu0
        %779 = vmatprep.mubr.f32.mxu0 0.0
        %780 = vmatmul.mubr.f32.gmra.mxu0 %v652
        %v781 = vpop.f32.mrf.mxu0
        %v782 = vadd.f32 0.0, %v781
        %v783 = vpop.f32.mrf.mxu0
        %784 = vmatprep.mubr.f32.mxu0 0.0
        %785 = vmatmul.mubr.f32.gmra.mxu0 %v655
        %v786 = vpop.f32.mrf.mxu0
        %v787 = vadd.f32 0.0, %v786
        %v788 = vpop.f32.mrf.mxu0
        %789 = vmatprep.mubr.f32.mxu0 0.0
        %790 = vmatmul.mubr.f32.gmra.mxu0 %v658
        %v791 = vpop.f32.mrf.mxu0
        %v792 = vadd.f32 0.0, %v791
        %v793 = vpop.f32.mrf.mxu0
        %794 = vmatprep.mubr.f32.mxu0 0.0
        %795 = vmatmul.mubr.f32.gmra.mxu0 %v661
        %v796 = vpop.f32.mrf.mxu0
        %v797 = vadd.f32 0.0, %v796
        %v798 = vpop.f32.mrf.mxu0
        %799 = vmatprep.mubr.f32.mxu0 0.0
        %800 = vmatmul.mubr.f32.gmra.mxu0 %v664
        %v801 = vpop.f32.mrf.mxu0
        %v802 = vadd.f32 0.0, %v801
        %v803 = vpop.f32.mrf.mxu0
        %804 = vmatprep.mubr.f32.mxu0 0.0
        %805 = vmatmul.mubr.f32.gmra.mxu0 %v667
        %v806 = vpop.f32.mrf.mxu0
        %v807 = vadd.f32 0.0, %v806
        %v808 = vpop.f32.mrf.mxu0
        %809 = vmatprep.mubr.f32.mxu0 0.0
        %810 = vmatmul.mubr.f32.gmra.mxu0 %v670
        %v811 = vpop.f32.mrf.mxu0
        %v812 = vadd.f32 0.0, %v811
        %v813 = vpop.f32.mrf.mxu0
        %814 = vmatprep.mubr.f32.mxu0 0.0
        %815 = vmatmul.mubr.f32.gmra.mxu0 %v673
        %v816 = vpop.f32.mrf.mxu0
        %v817 = vadd.f32 0.0, %v816
        %v818 = vpop.f32.mrf.mxu0
        %819 = vdwg.mxu0
        %v820 = vrot.slane %v593, 4
        %v821 = vadd.f32 %v593, %v820
        %v822 = vrot.slane %v821, 2
        %v823 = vadd.f32 %v821, %v822
        %v824 = vrot.slane %v823, 1
        %v825 = vadd.f32 %v823, %v824
        %826 = vmatprep.subr.mxu0 0.0
        %827 = vmatpush1.msra.mxu0 %v397
        %828 = vmatprep.subr.mxu0 0.0
        %829 = vmatpush1.msra.mxu0 %v396
        %830 = vmatprep.subr.mxu0 0.0
        %831 = vmatpush1.msra.mxu0 %v395
        %832 = vmatprep.subr.mxu0 0.0
        %833 = vmatpush1.msra.mxu0 %v394
        %834 = vmatprep.subr.mxu0 0.0
        %835 = vmatpush1.msra.mxu0 %v393
        %836 = vmatprep.subr.mxu0 0.0
        %837 = vmatpush1.msra.mxu0 %v392
        %838 = vmatprep.subr.mxu0 0.0
        %839 = vmatpush1.msra.mxu0 %v391
        %840 = vmatprep.subr.mxu0 0.0
        %841 = vmatpush1.msra.mxu0 %v390
        %842 = vmatprep.subr.mxu0 0.0
        %843 = vmatpush1.msra.mxu0 %v389
        %844 = vmatprep.subr.mxu0 0.0
        %845 = vmatpush1.msra.mxu0 %v388
        %846 = vmatprep.subr.mxu0 0.0
        %847 = vmatpush1.msra.mxu0 %v387
        %848 = vmatprep.subr.mxu0 0.0
        %849 = vmatpush1.msra.mxu0 %v386
        %850 = vmatprep.subr.mxu0 0.0
        %851 = vmatpush1.msra.mxu0 %v385
        %852 = vmatprep.subr.mxu0 0.0
        %853 = vmatpush1.msra.mxu0 %v384
        %854 = vmatprep.subr.mxu0 0.0
        %855 = vmatpush1.msra.mxu0 %v383
        %856 = vmatprep.subr.mxu0 0.0
        %857 = vmatpush1.msra.mxu0 %v382
        %858 = vmatprep.subr.mxu0 0.0
        %859 = vmatpush2.msra.mxu0 0.0
        %860 = vmatprep.subr.mxu0 0.0
        %861 = vmatpush2.msra.mxu0 0.0
        %862 = vmatprep.subr.mxu0 0.0
        %863 = vmatpush2.msra.mxu0 0.0
        %864 = vmatprep.subr.mxu0 0.0
        %865 = vmatpush2.msra.mxu0 0.0
        %866 = vmatprep.subr.mxu0 0.0
        %867 = vmatpush2.msra.mxu0 0.0
        %868 = vmatprep.subr.mxu0 0.0
        %869 = vmatpush2.msra.mxu0 0.0
        %870 = vmatprep.subr.mxu0 0.0
        %871 = vmatpush2.msra.mxu0 0.0
        %872 = vmatprep.subr.mxu0 0.0
        %873 = vmatpush2.msra.mxu0 0.0
        %874 = vmatprep.subr.mxu0 0.0
        %875 = vmatpush2.msra.mxu0 0.0
        %876 = vmatprep.subr.mxu0 0.0
        %877 = vmatpush2.msra.mxu0 0.0
        %878 = vmatprep.subr.mxu0 0.0
        %879 = vmatpush2.msra.mxu0 0.0
        %880 = vmatprep.subr.mxu0 0.0
        %881 = vmatpush2.msra.mxu0 0.0
        %882 = vmatprep.subr.mxu0 0.0
        %883 = vmatpush2.msra.mxu0 0.0
        %884 = vmatprep.subr.mxu0 0.0
        %885 = vmatpush2.msra.mxu0 0.0
        %886 = vmatprep.subr.mxu0 0.0
        %887 = vmatpush2.msra.mxu0 0.0
        %888 = vmatprep.subr.mxu0 0.0
        %889 = vmatpush2.msra.mxu0 0.0
        %890 = vmatprep.mubr.f32.mxu0 0.0
        %891 = vmatmul.mubr.f32.gmra.mxu0 %v593
        %v892 = vpop.f32.mrf.mxu0
        %v893 = vadd.f32 0.0, %v892
        %v894 = vpop.f32.mrf.mxu0
        %895 = vdwg.mxu0
        %vm896 = vcmp.gt.f32.partialorder %v474, 0.0
        %v897 = vsel %vm896, %v893, 0.0
        %898 = vxpose.xlu0.b32.start [1/16] %v897, 128
        %899 = vxpose.xlu0.b32.cont [2/16] 0.0, 128
        %900 = vxpose.xlu0.b32.cont [3/16] 0.0, 128
        %901 = vxpose.xlu0.b32.cont [4/16] 0.0, 128
        %902 = vxpose.xlu0.b32.cont [5/16] 0.0, 128
        %903 = vxpose.xlu0.b32.cont [6/16] 0.0, 128
        %904 = vxpose.xlu0.b32.cont [7/16] 0.0, 128
        %905 = vxpose.xlu0.b32.cont [8/16] 0.0, 128
        %906 = vxpose.xlu0.b32.cont [9/16] 0.0, 128
        %907 = vxpose.xlu0.b32.cont [10/16] 0.0, 128
        %908 = vxpose.xlu0.b32.cont [11/16] 0.0, 128
        %909 = vxpose.xlu0.b32.cont [12/16] 0.0, 128
        %910 = vxpose.xlu0.b32.cont [13/16] 0.0, 128
        %911 = vxpose.xlu0.b32.cont [14/16] 0.0, 128
        %912 = vxpose.xlu0.b32.cont [15/16] 0.0, 128
        %913 = vxpose.xlu0.b32.end [16/16] 0.0, 128
        %v914 = vpop.trf.xlu0
        %v915 = vpop.trf.xlu0
        %v916 = vpop.trf.xlu0
        %v917 = vpop.trf.xlu0
        %v918 = vpop.trf.xlu0
        %v919 = vpop.trf.xlu0
        %v920 = vpop.trf.xlu0
        %v921 = vpop.trf.xlu0
        %v922 = vpop.trf.xlu0
        %v923 = vpop.trf.xlu0
        %v924 = vpop.trf.xlu0
        %v925 = vpop.trf.xlu0
        %v926 = vpop.trf.xlu0
        %v927 = vpop.trf.xlu0
        %v928 = vpop.trf.xlu0
        %v929 = vpop.trf.xlu0
        %v931 = vsel %vm626, %v914, 0
        %v934 = vsel %vm626, %v915, 0
        %v937 = vsel %vm626, %v916, 0
        %v940 = vsel %vm626, %v917, 0
        %v943 = vsel %vm626, %v918, 0
        %v946 = vsel %vm626, %v919, 0
        %v949 = vsel %vm626, %v920, 0
        %v952 = vsel %vm626, %v921, 0
        %v955 = vsel %vm626, %v922, 0
        %v958 = vsel %vm626, %v923, 0
        %v961 = vsel %vm626, %v924, 0
        %v964 = vsel %vm626, %v925, 0
        %v967 = vsel %vm626, %v926, 0
        %v970 = vsel %vm626, %v927, 0
        %v973 = vsel %vm626, %v928, 0
        %v976 = vsel %vm626, %v929, 0
        %978 = vmatprep.subr.mxu0 0.0
        %979 = vmatpush1.msra.mxu0 0.0
        %980 = vmatprep.subr.mxu0 0.0
        %981 = vmatpush1.msra.mxu0 0.0
        %982 = vmatprep.subr.mxu0 0.0
        %983 = vmatpush1.msra.mxu0 0.0
        %984 = vmatprep.subr.mxu0 0.0
        %985 = vmatpush1.msra.mxu0 0.0
        %986 = vmatprep.subr.mxu0 0.0
        %987 = vmatpush1.msra.mxu0 0.0
        %988 = vmatprep.subr.mxu0 0.0
        %989 = vmatpush1.msra.mxu0 0.0
        %990 = vmatprep.subr.mxu0 0.0
        %991 = vmatpush1.msra.mxu0 0.0
        %992 = vmatprep.subr.mxu0 0.0
        %993 = vmatpush1.msra.mxu0 0.0
        %994 = vmatprep.subr.mxu0 0.0
        %995 = vmatpush1.msra.mxu0 0.0
        %996 = vmatprep.subr.mxu0 0.0
        %997 = vmatpush1.msra.mxu0 0.0
        %998 = vmatprep.subr.mxu0 0.0
        %999 = vmatpush1.msra.mxu0 0.0
        %1000 = vmatprep.subr.mxu0 0.0
        %1001 = vmatpush1.msra.mxu0 0.0
        %1002 = vmatprep.subr.mxu0 0.0
        %1003 = vmatpush1.msra.mxu0 0.0
        %1004 = vmatprep.subr.mxu0 0.0
        %1005 = vmatpush1.msra.mxu0 0.0
        %1006 = vmatprep.subr.mxu0 0.0
        %1007 = vmatpush1.msra.mxu0 0.0
        %1008 = vmatprep.subr.mxu0 0.0
        %1009 = vmatpush1.msra.mxu0 %v362
        %1010 = vmatprep.subr.mxu0 0.0
        %1011 = vmatpush2.msra.mxu0 0.0
        %1012 = vmatprep.subr.mxu0 0.0
        %1013 = vmatpush2.msra.mxu0 0.0
        %1014 = vmatprep.subr.mxu0 0.0
        %1015 = vmatpush2.msra.mxu0 0.0
        %1016 = vmatprep.subr.mxu0 0.0
        %1017 = vmatpush2.msra.mxu0 0.0
        %1018 = vmatprep.subr.mxu0 0.0
        %1019 = vmatpush2.msra.mxu0 0.0
        %1020 = vmatprep.subr.mxu0 0.0
        %1021 = vmatpush2.msra.mxu0 0.0
        %1022 = vmatprep.subr.mxu0 0.0
        %1023 = vmatpush2.msra.mxu0 0.0
        %1024 = vmatprep.subr.mxu0 0.0
        %1025 = vmatpush2.msra.mxu0 0.0
        %1026 = vmatprep.subr.mxu0 0.0
        %1027 = vmatpush2.msra.mxu0 0.0
        %1028 = vmatprep.subr.mxu0 0.0
        %1029 = vmatpush2.msra.mxu0 0.0
        %1030 = vmatprep.subr.mxu0 0.0
        %1031 = vmatpush2.msra.mxu0 0.0
        %1032 = vmatprep.subr.mxu0 0.0
        %1033 = vmatpush2.msra.mxu0 0.0
        %1034 = vmatprep.subr.mxu0 0.0
        %1035 = vmatpush2.msra.mxu0 0.0
        %1036 = vmatprep.subr.mxu0 0.0
        %1037 = vmatpush2.msra.mxu0 0.0
        %1038 = vmatprep.subr.mxu0 0.0
        %1039 = vmatpush2.msra.mxu0 0.0
        %1040 = vmatprep.subr.mxu0 0.0
        %1041 = vmatpush2.msra.mxu0 0.0
        %1042 = vmatprep.mubr.f32.mxu0 0.0
        %1043 = vmatmul.mubr.f32.gmra.mxu0 %v931
        %v1044 = vpop.f32.mrf.mxu0
        %v1045 = vadd.f32 0.0, %v1044
        %v1046 = vpop.f32.mrf.mxu0
        %1047 = vmatprep.mubr.f32.mxu0 0.0
        %1048 = vmatmul.mubr.f32.gmra.mxu0 %v934
        %v1049 = vpop.f32.mrf.mxu0
        %v1050 = vadd.f32 0.0, %v1049
        %v1051 = vpop.f32.mrf.mxu0
        %1052 = vmatprep.mubr.f32.mxu0 0.0
        %1053 = vmatmul.mubr.f32.gmra.mxu0 %v937
        %v1054 = vpop.f32.mrf.mxu0
        %v1055 = vadd.f32 0.0, %v1054
        %v1056 = vpop.f32.mrf.mxu0
        %1057 = vmatprep.mubr.f32.mxu0 0.0
        %1058 = vmatmul.mubr.f32.gmra.mxu0 %v940
        %v1059 = vpop.f32.mrf.mxu0
        %v1060 = vadd.f32 0.0, %v1059
        %v1061 = vpop.f32.mrf.mxu0
        %1062 = vmatprep.mubr.f32.mxu0 0.0
        %1063 = vmatmul.mubr.f32.gmra.mxu0 %v943
        %v1064 = vpop.f32.mrf.mxu0
        %v1065 = vadd.f32 0.0, %v1064
        %v1066 = vpop.f32.mrf.mxu0
        %1067 = vmatprep.mubr.f32.mxu0 0.0
        %1068 = vmatmul.mubr.f32.gmra.mxu0 %v946
        %v1069 = vpop.f32.mrf.mxu0
        %v1070 = vadd.f32 0.0, %v1069
        %v1071 = vpop.f32.mrf.mxu0
        %1072 = vmatprep.mubr.f32.mxu0 0.0
        %1073 = vmatmul.mubr.f32.gmra.mxu0 %v949
        %v1074 = vpop.f32.mrf.mxu0
        %v1075 = vadd.f32 0.0, %v1074
        %v1076 = vpop.f32.mrf.mxu0
        %1077 = vmatprep.mubr.f32.mxu0 0.0
        %1078 = vmatmul.mubr.f32.gmra.mxu0 %v952
        %v1079 = vpop.f32.mrf.mxu0
        %v1080 = vadd.f32 0.0, %v1079
        %v1081 = vpop.f32.mrf.mxu0
        %1082 = vmatprep.mubr.f32.mxu0 0.0
        %1083 = vmatmul.mubr.f32.gmra.mxu0 %v955
        %v1084 = vpop.f32.mrf.mxu0
        %v1085 = vadd.f32 0.0, %v1084
        %v1086 = vpop.f32.mrf.mxu0
        %1087 = vmatprep.mubr.f32.mxu0 0.0
        %1088 = vmatmul.mubr.f32.gmra.mxu0 %v958
        %v1089 = vpop.f32.mrf.mxu0
        %v1090 = vadd.f32 0.0, %v1089
        %v1091 = vpop.f32.mrf.mxu0
        %1092 = vmatprep.mubr.f32.mxu0 0.0
        %1093 = vmatmul.mubr.f32.gmra.mxu0 %v961
        %v1094 = vpop.f32.mrf.mxu0
        %v1095 = vadd.f32 0.0, %v1094
        %v1096 = vpop.f32.mrf.mxu0
        %1097 = vmatprep.mubr.f32.mxu0 0.0
        %1098 = vmatmul.mubr.f32.gmra.mxu0 %v964
        %v1099 = vpop.f32.mrf.mxu0
        %v1100 = vadd.f32 0.0, %v1099
        %v1101 = vpop.f32.mrf.mxu0
        %1102 = vmatprep.mubr.f32.mxu0 0.0
        %1103 = vmatmul.mubr.f32.gmra.mxu0 %v967
        %v1104 = vpop.f32.mrf.mxu0
        %v1105 = vadd.f32 0.0, %v1104
        %v1106 = vpop.f32.mrf.mxu0
        %1107 = vmatprep.mubr.f32.mxu0 0.0
        %1108 = vmatmul.mubr.f32.gmra.mxu0 %v970
        %v1109 = vpop.f32.mrf.mxu0
        %v1110 = vadd.f32 0.0, %v1109
        %v1111 = vpop.f32.mrf.mxu0
        %1112 = vmatprep.mubr.f32.mxu0 0.0
        %1113 = vmatmul.mubr.f32.gmra.mxu0 %v973
        %v1114 = vpop.f32.mrf.mxu0
        %v1115 = vadd.f32 0.0, %v1114
        %v1116 = vpop.f32.mrf.mxu0
        %1117 = vmatprep.mubr.f32.mxu0 0.0
        %1118 = vmatmul.mubr.f32.gmra.mxu0 %v976
        %v1119 = vpop.f32.mrf.mxu0
        %v1120 = vadd.f32 0.0, %v1119
        %v1121 = vpop.f32.mrf.mxu0
        %1122 = vdwg.mxu0
        %v1123 = vrot.slane %v897, 4
        %v1124 = vadd.f32 %v897, %v1123
        %v1125 = vrot.slane %v1124, 2
        %v1126 = vadd.f32 %v1124, %v1125
        %v1127 = vrot.slane %v1126, 1
        %v1128 = vadd.f32 %v1126, %v1127
        %v1129 = vmul.f32 %v1045, 0.005
        %v1130 = vmul.f32 %v1050, 0.005
        %v1131 = vmul.f32 %v1055, 0.005
        %v1132 = vmul.f32 %v1060, 0.005
        %v1133 = vmul.f32 %v1065, 0.005
        %v1134 = vmul.f32 %v1070, 0.005
        %v1135 = vmul.f32 %v1075, 0.005
        %v1136 = vmul.f32 %v1080, 0.005
        %v1137 = vmul.f32 %v1085, 0.005
        %v1138 = vmul.f32 %v1090, 0.005
        %v1139 = vmul.f32 %v1095, 0.005
        %v1140 = vmul.f32 %v1100, 0.005
        %v1141 = vmul.f32 %v1105, 0.005
        %v1142 = vmul.f32 %v1110, 0.005
        %v1143 = vmul.f32 %v1115, 0.005
        %v1144 = vmul.f32 %v1120, 0.005
        %v1145 = vsub.f32 %v365, %v1129
        %v1146 = vsub.f32 %v366, %v1130
        %v1147 = vsub.f32 %v367, %v1131
        %v1148 = vsub.f32 %v368, %v1132
        %v1149 = vsub.f32 %v369, %v1133
        %v1150 = vsub.f32 %v370, %v1134
        %v1151 = vsub.f32 %v371, %v1135
        %v1152 = vsub.f32 %v372, %v1136
        %v1153 = vsub.f32 %v373, %v1137
        %v1154 = vsub.f32 %v374, %v1138
        %v1155 = vsub.f32 %v375, %v1139
        %v1156 = vsub.f32 %v376, %v1140
        %v1157 = vsub.f32 %v377, %v1141
        %v1158 = vsub.f32 %v378, %v1142
        %v1159 = vsub.f32 %v379, %v1143
        %v1160 = vsub.f32 %v380, %v1144
        %v1161 = vmul.f32 %v1128, 0.005
        %v1162 = vsub.f32 %v381, %v1161
        %v1163 = vmul.f32 %v742, 0.005
        %v1164 = vmul.f32 %v747, 0.005
        %v1165 = vmul.f32 %v752, 0.005
        %v1166 = vmul.f32 %v757, 0.005
        %v1167 = vmul.f32 %v762, 0.005
        %v1168 = vmul.f32 %v767, 0.005
        %v1169 = vmul.f32 %v772, 0.005
        %v1170 = vmul.f32 %v777, 0.005
        %v1171 = vmul.f32 %v782, 0.005
        %v1172 = vmul.f32 %v787, 0.005
        %v1173 = vmul.f32 %v792, 0.005
        %v1174 = vmul.f32 %v797, 0.005
        %v1175 = vmul.f32 %v802, 0.005
        %v1176 = vmul.f32 %v807, 0.005
        %v1177 = vmul.f32 %v812, 0.005
        %v1178 = vmul.f32 %v817, 0.005
        %v1179 = vsub.f32 %v382, %v1163
        %v1180 = vsub.f32 %v383, %v1164
        %v1181 = vsub.f32 %v384, %v1165
        %v1182 = vsub.f32 %v385, %v1166
        %v1183 = vsub.f32 %v386, %v1167
        %v1184 = vsub.f32 %v387, %v1168
        %v1185 = vsub.f32 %v388, %v1169
        %v1186 = vsub.f32 %v389, %v1170
        %v1187 = vsub.f32 %v390, %v1171
        %v1188 = vsub.f32 %v391, %v1172
        %v1189 = vsub.f32 %v392, %v1173
        %v1190 = vsub.f32 %v393, %v1174
        %v1191 = vsub.f32 %v394, %v1175
        %v1192 = vsub.f32 %v395, %v1176
        %v1193 = vsub.f32 %v396, %v1177
        %v1194 = vsub.f32 %v397, %v1178
        %v1195 = vmul.f32 %v825, 0.005
        %v1196 = vsub.f32 %v398, %v1195
        %v1197 = vmul.f32 %v579, 0.005
        %v1198 = vsub.f32 %v399, %v1197
        %s1199 = smul.f32 %s590, 0.005
        %s1200 = ssub.f32 %s400, %s1199
        %v1202 = vlaneseq
        %v1203 = vshrl.u32 %v1202, 7
        %v1204 = vsub.s32 0, %v1203
        %v1205 = vrot.slane %v1162, %v1204
        %1207 = vmatprep.subr.mxu0 0.0
        %1208 = vmatpush1.xpose.msra.mxu0 %v1160
        %1209 = vmatprep.subr.mxu0 0.0
        %1210 = vmatpush1.xpose.msra.mxu0 %v1159
        %1211 = vmatprep.subr.mxu0 0.0
        %1212 = vmatpush1.xpose.msra.mxu0 %v1158
        %1213 = vmatprep.subr.mxu0 0.0
        %1214 = vmatpush1.xpose.msra.mxu0 %v1157
        %1215 = vmatprep.subr.mxu0 0.0
        %1216 = vmatpush1.xpose.msra.mxu0 %v1156
        %1217 = vmatprep.subr.mxu0 0.0
        %1218 = vmatpush1.xpose.msra.mxu0 %v1155
        %1219 = vmatprep.subr.mxu0 0.0
        %1220 = vmatpush1.xpose.msra.mxu0 %v1154
        %1221 = vmatprep.subr.mxu0 0.0
        %1222 = vmatpush1.xpose.msra.mxu0 %v1153
        %1223 = vmatprep.subr.mxu0 0.0
        %1224 = vmatpush1.xpose.msra.mxu0 %v1152
        %1225 = vmatprep.subr.mxu0 0.0
        %1226 = vmatpush1.xpose.msra.mxu0 %v1151
        %1227 = vmatprep.subr.mxu0 0.0
        %1228 = vmatpush1.xpose.msra.mxu0 %v1150
        %1229 = vmatprep.subr.mxu0 0.0
        %1230 = vmatpush1.xpose.msra.mxu0 %v1149
        %1231 = vmatprep.subr.mxu0 0.0
        %1232 = vmatpush1.xpose.msra.mxu0 %v1148
        %1233 = vmatprep.subr.mxu0 0.0
        %1234 = vmatpush1.xpose.msra.mxu0 %v1147
        %1235 = vmatprep.subr.mxu0 0.0
        %1236 = vmatpush1.xpose.msra.mxu0 %v1146
        %1237 = vmatprep.subr.mxu0 0.0
        %1238 = vmatpush1.xpose.msra.mxu0 %v1145
        %1239 = vmatprep.subr.mxu0 0.0
        %1240 = vmatpush2.xpose.msra.mxu0 0.0
        %1241 = vmatprep.subr.mxu0 0.0
        %1242 = vmatpush2.xpose.msra.mxu0 0.0
        %1243 = vmatprep.subr.mxu0 0.0
        %1244 = vmatpush2.xpose.msra.mxu0 0.0
        %1245 = vmatprep.subr.mxu0 0.0
        %1246 = vmatpush2.xpose.msra.mxu0 0.0
        %1247 = vmatprep.subr.mxu0 0.0
        %1248 = vmatpush2.xpose.msra.mxu0 0.0
        %1249 = vmatprep.subr.mxu0 0.0
        %1250 = vmatpush2.xpose.msra.mxu0 0.0
        %1251 = vmatprep.subr.mxu0 0.0
        %1252 = vmatpush2.xpose.msra.mxu0 0.0
        %1253 = vmatprep.subr.mxu0 0.0
        %1254 = vmatpush2.xpose.msra.mxu0 0.0
        %1255 = vmatprep.subr.mxu0 0.0
        %1256 = vmatpush2.xpose.msra.mxu0 0.0
        %1257 = vmatprep.subr.mxu0 0.0
        %1258 = vmatpush2.xpose.msra.mxu0 0.0
        %1259 = vmatprep.subr.mxu0 0.0
        %1260 = vmatpush2.xpose.msra.mxu0 0.0
        %1261 = vmatprep.subr.mxu0 0.0
        %1262 = vmatpush2.xpose.msra.mxu0 0.0
        %1263 = vmatprep.subr.mxu0 0.0
        %1264 = vmatpush2.xpose.msra.mxu0 0.0
        %1265 = vmatprep.subr.mxu0 0.0
        %1266 = vmatpush2.xpose.msra.mxu0 0.0
        %1267 = vmatprep.subr.mxu0 0.0
        %1268 = vmatpush2.xpose.msra.mxu0 0.0
        %1269 = vmatprep.subr.mxu0 0.0
        %1270 = vmatpush2.xpose.msra.mxu0 0.0
        %1271 = vmatprep.mubr.f32.mxu0 0.0
        %1272 = vmatmul.mubr.f32.gmra.mxu0 %v362
        %v1273 = vpop.f32.mrf.mxu0
        %v1274 = vadd.f32 %v1205, %v1273
        %v1275 = vpop.f32.mrf.mxu0
        %1276 = vdwg.mxu0
        %v1277 = vmax.f32 %v1274, 0.0
        %v1279 = vlaneseq
        %v1280 = vshrl.u32 %v1279, 7
        %v1281 = vsub.s32 0, %v1280
        %v1282 = vrot.slane %v1196, %v1281
        %1284 = vmatprep.subr.mxu0 0.0
        %1285 = vmatpush1.xpose.msra.mxu0 %v1194
        %1286 = vmatprep.subr.mxu0 0.0
        %1287 = vmatpush1.xpose.msra.mxu0 %v1193
        %1288 = vmatprep.subr.mxu0 0.0
        %1289 = vmatpush1.xpose.msra.mxu0 %v1192
        %1290 = vmatprep.subr.mxu0 0.0
        %1291 = vmatpush1.xpose.msra.mxu0 %v1191
        %1292 = vmatprep.subr.mxu0 0.0
        %1293 = vmatpush1.xpose.msra.mxu0 %v1190
        %1294 = vmatprep.subr.mxu0 0.0
        %1295 = vmatpush1.xpose.msra.mxu0 %v1189
        %1296 = vmatprep.subr.mxu0 0.0
        %1297 = vmatpush1.xpose.msra.mxu0 %v1188
        %1298 = vmatprep.subr.mxu0 0.0
        %1299 = vmatpush1.xpose.msra.mxu0 %v1187
        %1300 = vmatprep.subr.mxu0 0.0
        %1301 = vmatpush1.xpose.msra.mxu0 %v1186
        %1302 = vmatprep.subr.mxu0 0.0
        %1303 = vmatpush1.xpose.msra.mxu0 %v1185
        %1304 = vmatprep.subr.mxu0 0.0
        %1305 = vmatpush1.xpose.msra.mxu0 %v1184
        %1306 = vmatprep.subr.mxu0 0.0
        %1307 = vmatpush1.xpose.msra.mxu0 %v1183
        %1308 = vmatprep.subr.mxu0 0.0
        %1309 = vmatpush1.xpose.msra.mxu0 %v1182
        %1310 = vmatprep.subr.mxu0 0.0
        %1311 = vmatpush1.xpose.msra.mxu0 %v1181
        %1312 = vmatprep.subr.mxu0 0.0
        %1313 = vmatpush1.xpose.msra.mxu0 %v1180
        %1314 = vmatprep.subr.mxu0 0.0
        %1315 = vmatpush1.xpose.msra.mxu0 %v1179
        %1316 = vmatprep.subr.mxu0 0.0
        %1317 = vmatpush2.xpose.msra.mxu0 0.0
        %1318 = vmatprep.subr.mxu0 0.0
        %1319 = vmatpush2.xpose.msra.mxu0 0.0
        %1320 = vmatprep.subr.mxu0 0.0
        %1321 = vmatpush2.xpose.msra.mxu0 0.0
        %1322 = vmatprep.subr.mxu0 0.0
        %1323 = vmatpush2.xpose.msra.mxu0 0.0
        %1324 = vmatprep.subr.mxu0 0.0
        %1325 = vmatpush2.xpose.msra.mxu0 0.0
        %1326 = vmatprep.subr.mxu0 0.0
        %1327 = vmatpush2.xpose.msra.mxu0 0.0
        %1328 = vmatprep.subr.mxu0 0.0
        %1329 = vmatpush2.xpose.msra.mxu0 0.0
        %1330 = vmatprep.subr.mxu0 0.0
        %1331 = vmatpush2.xpose.msra.mxu0 0.0
        %1332 = vmatprep.subr.mxu0 0.0
        %1333 = vmatpush2.xpose.msra.mxu0 0.0
        %1334 = vmatprep.subr.mxu0 0.0
        %1335 = vmatpush2.xpose.msra.mxu0 0.0
        %1336 = vmatprep.subr.mxu0 0.0
        %1337 = vmatpush2.xpose.msra.mxu0 0.0
        %1338 = vmatprep.subr.mxu0 0.0
        %1339 = vmatpush2.xpose.msra.mxu0 0.0
        %1340 = vmatprep.subr.mxu0 0.0
        %1341 = vmatpush2.xpose.msra.mxu0 0.0
        %1342 = vmatprep.subr.mxu0 0.0
        %1343 = vmatpush2.xpose.msra.mxu0 0.0
        %1344 = vmatprep.subr.mxu0 0.0
        %1345 = vmatpush2.xpose.msra.mxu0 0.0
        %1346 = vmatprep.subr.mxu0 0.0
        %1347 = vmatpush2.xpose.msra.mxu0 0.0
        %1348 = vmatprep.mubr.f32.mxu0 0.0
        %1349 = vmatmul.mubr.f32.gmra.mxu0 %v1277
        %v1350 = vpop.f32.mrf.mxu0
        %v1351 = vadd.f32 %v1282, %v1350
        %v1352 = vpop.f32.mrf.mxu0
        %1353 = vdwg.mxu0
        %v1354 = vmax.f32 %v1351, 0.0
        %v1356 = vlaneseq
        %v1357 = vshrl.u32 %v1356, 7
        %v1358 = vsub.s32 0, %v1357
        %v1359 = vrot.slane %v1198, %v1358
        %v1361 = vmul.f32 %v1354, %v1359
        %1362 = vadd.xlane.f32.xlu0 %v1361
        %v1363 = vpop.xlane.xlu0 %1362
        %v1364 = vstv %s1200
        %v1365 = vadd.f32 %v1363, %v1364
        %v1366 = vsub.f32 %v1365, %v363
        %v1367 = vmul.f32 %v1366, 0.25
        %1369 = vset.pattern.permute.xlu0 0
        %1370 = vperm.xlu0 %1369, %v1367
        %v1371 = vpop.permute.xlu0 %1370
        %v1373 = vmul.f32 %v1371, %v1354
        %v1374 = vrot.slane %v1373, 4
        %v1375 = vadd.f32 %v1373, %v1374
        %v1376 = vrot.slane %v1375, 2
        %v1377 = vadd.f32 %v1375, %v1376
        %v1378 = vrot.slane %v1377, 1
        %v1379 = vadd.f32 %v1377, %v1378
        %v1380 = vsel %vm580, %v1367, 0.0
        %1381 = vadd.xlane.f32.xlu0 %v1380
        %v1382 = vpop.xlane.xlu0 %1381
        %v1383 = vrot.slane %v1382, 4
        %v1384 = vadd.f32 %v1382, %v1383
        %v1385 = vrot.slane %v1384, 2
        %v1386 = vadd.f32 %v1384, %v1385
        %v1387 = vrot.slane %v1386, 1
        %v1388 = vadd.f32 %v1386, %v1387
        %s1389 = vtos %v1388
        %v1390 = vmul.f32 %v1371, %v1359
        %vm1391 = vcmp.gt.f32.partialorder %v1351, 0.0
        %v1392 = vsel %vm1391, %v1390, 0.0
        %1393 = vxpose.xlu0.b32.start [1/16] %v1392, 128
        %1394 = vxpose.xlu0.b32.cont [2/16] 0.0, 128
        %1395 = vxpose.xlu0.b32.cont [3/16] 0.0, 128
        %1396 = vxpose.xlu0.b32.cont [4/16] 0.0, 128
        %1397 = vxpose.xlu0.b32.cont [5/16] 0.0, 128
        %1398 = vxpose.xlu0.b32.cont [6/16] 0.0, 128
        %1399 = vxpose.xlu0.b32.cont [7/16] 0.0, 128
        %1400 = vxpose.xlu0.b32.cont [8/16] 0.0, 128
        %1401 = vxpose.xlu0.b32.cont [9/16] 0.0, 128
        %1402 = vxpose.xlu0.b32.cont [10/16] 0.0, 128
        %1403 = vxpose.xlu0.b32.cont [11/16] 0.0, 128
        %1404 = vxpose.xlu0.b32.cont [12/16] 0.0, 128
        %1405 = vxpose.xlu0.b32.cont [13/16] 0.0, 128
        %1406 = vxpose.xlu0.b32.cont [14/16] 0.0, 128
        %1407 = vxpose.xlu0.b32.cont [15/16] 0.0, 128
        %1408 = vxpose.xlu0.b32.end [16/16] 0.0, 128
        %v1409 = vpop.trf.xlu0
        %v1410 = vpop.trf.xlu0
        %v1411 = vpop.trf.xlu0
        %v1412 = vpop.trf.xlu0
        %v1413 = vpop.trf.xlu0
        %v1414 = vpop.trf.xlu0
        %v1415 = vpop.trf.xlu0
        %v1416 = vpop.trf.xlu0
        %v1417 = vpop.trf.xlu0
        %v1418 = vpop.trf.xlu0
        %v1419 = vpop.trf.xlu0
        %v1420 = vpop.trf.xlu0
        %v1421 = vpop.trf.xlu0
        %v1422 = vpop.trf.xlu0
        %v1423 = vpop.trf.xlu0
        %v1424 = vpop.trf.xlu0
        %v1426 = vsel %vm626, %v1409, 0
        %v1429 = vsel %vm626, %v1410, 0
        %v1432 = vsel %vm626, %v1411, 0
        %v1435 = vsel %vm626, %v1412, 0
        %v1438 = vsel %vm626, %v1413, 0
        %v1441 = vsel %vm626, %v1414, 0
        %v1444 = vsel %vm626, %v1415, 0
        %v1447 = vsel %vm626, %v1416, 0
        %v1450 = vsel %vm626, %v1417, 0
        %v1453 = vsel %vm626, %v1418, 0
        %v1456 = vsel %vm626, %v1419, 0
        %v1459 = vsel %vm626, %v1420, 0
        %v1462 = vsel %vm626, %v1421, 0
        %v1465 = vsel %vm626, %v1422, 0
        %v1468 = vsel %vm626, %v1423, 0
        %v1471 = vsel %vm626, %v1424, 0
        %1473 = vmatprep.subr.mxu0 0.0
        %1474 = vmatpush1.msra.mxu0 0.0
        %1475 = vmatprep.subr.mxu0 0.0
        %1476 = vmatpush1.msra.mxu0 0.0
        %1477 = vmatprep.subr.mxu0 0.0
        %1478 = vmatpush1.msra.mxu0 0.0
        %1479 = vmatprep.subr.mxu0 0.0
        %1480 = vmatpush1.msra.mxu0 0.0
        %1481 = vmatprep.subr.mxu0 0.0
        %1482 = vmatpush1.msra.mxu0 0.0
        %1483 = vmatprep.subr.mxu0 0.0
        %1484 = vmatpush1.msra.mxu0 0.0
        %1485 = vmatprep.subr.mxu0 0.0
        %1486 = vmatpush1.msra.mxu0 0.0
        %1487 = vmatprep.subr.mxu0 0.0
        %1488 = vmatpush1.msra.mxu0 0.0
        %1489 = vmatprep.subr.mxu0 0.0
        %1490 = vmatpush1.msra.mxu0 0.0
        %1491 = vmatprep.subr.mxu0 0.0
        %1492 = vmatpush1.msra.mxu0 0.0
        %1493 = vmatprep.subr.mxu0 0.0
        %1494 = vmatpush1.msra.mxu0 0.0
        %1495 = vmatprep.subr.mxu0 0.0
        %1496 = vmatpush1.msra.mxu0 0.0
        %1497 = vmatprep.subr.mxu0 0.0
        %1498 = vmatpush1.msra.mxu0 0.0
        %1499 = vmatprep.subr.mxu0 0.0
        %1500 = vmatpush1.msra.mxu0 0.0
        %1501 = vmatprep.subr.mxu0 0.0
        %1502 = vmatpush1.msra.mxu0 0.0
        %1503 = vmatprep.subr.mxu0 0.0
        %1504 = vmatpush1.msra.mxu0 %v1277
        %1505 = vmatprep.subr.mxu0 0.0
        %1506 = vmatpush2.msra.mxu0 0.0
        %1507 = vmatprep.subr.mxu0 0.0
        %1508 = vmatpush2.msra.mxu0 0.0
        %1509 = vmatprep.subr.mxu0 0.0
        %1510 = vmatpush2.msra.mxu0 0.0
        %1511 = vmatprep.subr.mxu0 0.0
        %1512 = vmatpush2.msra.mxu0 0.0
        %1513 = vmatprep.subr.mxu0 0.0
        %1514 = vmatpush2.msra.mxu0 0.0
        %1515 = vmatprep.subr.mxu0 0.0
        %1516 = vmatpush2.msra.mxu0 0.0
        %1517 = vmatprep.subr.mxu0 0.0
        %1518 = vmatpush2.msra.mxu0 0.0
        %1519 = vmatprep.subr.mxu0 0.0
        %1520 = vmatpush2.msra.mxu0 0.0
        %1521 = vmatprep.subr.mxu0 0.0
        %1522 = vmatpush2.msra.mxu0 0.0
        %1523 = vmatprep.subr.mxu0 0.0
        %1524 = vmatpush2.msra.mxu0 0.0
        %1525 = vmatprep.subr.mxu0 0.0
        %1526 = vmatpush2.msra.mxu0 0.0
        %1527 = vmatprep.subr.mxu0 0.0
        %1528 = vmatpush2.msra.mxu0 0.0
        %1529 = vmatprep.subr.mxu0 0.0
        %1530 = vmatpush2.msra.mxu0 0.0
        %1531 = vmatprep.subr.mxu0 0.0
        %1532 = vmatpush2.msra.mxu0 0.0
        %1533 = vmatprep.subr.mxu0 0.0
        %1534 = vmatpush2.msra.mxu0 0.0
        %1535 = vmatprep.subr.mxu0 0.0
        %1536 = vmatpush2.msra.mxu0 0.0
        %1537 = vmatprep.mubr.f32.mxu0 0.0
        %1538 = vmatmul.mubr.f32.gmra.mxu0 %v1426
        %v1539 = vpop.f32.mrf.mxu0
        %v1540 = vadd.f32 0.0, %v1539
        %v1541 = vpop.f32.mrf.mxu0
        %1542 = vmatprep.mubr.f32.mxu0 0.0
        %1543 = vmatmul.mubr.f32.gmra.mxu0 %v1429
        %v1544 = vpop.f32.mrf.mxu0
        %v1545 = vadd.f32 0.0, %v1544
        %v1546 = vpop.f32.mrf.mxu0
        %1547 = vmatprep.mubr.f32.mxu0 0.0
        %1548 = vmatmul.mubr.f32.gmra.mxu0 %v1432
        %v1549 = vpop.f32.mrf.mxu0
        %v1550 = vadd.f32 0.0, %v1549
        %v1551 = vpop.f32.mrf.mxu0
        %1552 = vmatprep.mubr.f32.mxu0 0.0
        %1553 = vmatmul.mubr.f32.gmra.mxu0 %v1435
        %v1554 = vpop.f32.mrf.mxu0
        %v1555 = vadd.f32 0.0, %v1554
        %v1556 = vpop.f32.mrf.mxu0
        %1557 = vmatprep.mubr.f32.mxu0 0.0
        %1558 = vmatmul.mubr.f32.gmra.mxu0 %v1438
        %v1559 = vpop.f32.mrf.mxu0
        %v1560 = vadd.f32 0.0, %v1559
        %v1561 = vpop.f32.mrf.mxu0
        %1562 = vmatprep.mubr.f32.mxu0 0.0
        %1563 = vmatmul.mubr.f32.gmra.mxu0 %v1441
        %v1564 = vpop.f32.mrf.mxu0
        %v1565 = vadd.f32 0.0, %v1564
        %v1566 = vpop.f32.mrf.mxu0
        %1567 = vmatprep.mubr.f32.mxu0 0.0
        %1568 = vmatmul.mubr.f32.gmra.mxu0 %v1444
        %v1569 = vpop.f32.mrf.mxu0
        %v1570 = vadd.f32 0.0, %v1569
        %v1571 = vpop.f32.mrf.mxu0
        %1572 = vmatprep.mubr.f32.mxu0 0.0
        %1573 = vmatmul.mubr.f32.gmra.mxu0 %v1447
        %v1574 = vpop.f32.mrf.mxu0
        %v1575 = vadd.f32 0.0, %v1574
        %v1576 = vpop.f32.mrf.mxu0
        %1577 = vmatprep.mubr.f32.mxu0 0.0
        %1578 = vmatmul.mubr.f32.gmra.mxu0 %v1450
        %v1579 = vpop.f32.mrf.mxu0
        %v1580 = vadd.f32 0.0, %v1579
        %v1581 = vpop.f32.mrf.mxu0
        %1582 = vmatprep.mubr.f32.mxu0 0.0
        %1583 = vmatmul.mubr.f32.gmra.mxu0 %v1453
        %v1584 = vpop.f32.mrf.mxu0
        %v1585 = vadd.f32 0.0, %v1584
        %v1586 = vpop.f32.mrf.mxu0
        %1587 = vmatprep.mubr.f32.mxu0 0.0
        %1588 = vmatmul.mubr.f32.gmra.mxu0 %v1456
        %v1589 = vpop.f32.mrf.mxu0
        %v1590 = vadd.f32 0.0, %v1589
        %v1591 = vpop.f32.mrf.mxu0
        %1592 = vmatprep.mubr.f32.mxu0 0.0
        %1593 = vmatmul.mubr.f32.gmra.mxu0 %v1459
        %v1594 = vpop.f32.mrf.mxu0
        %v1595 = vadd.f32 0.0, %v1594
        %v1596 = vpop.f32.mrf.mxu0
        %1597 = vmatprep.mubr.f32.mxu0 0.0
        %1598 = vmatmul.mubr.f32.gmra.mxu0 %v1462
        %v1599 = vpop.f32.mrf.mxu0
        %v1600 = vadd.f32 0.0, %v1599
        %v1601 = vpop.f32.mrf.mxu0
        %1602 = vmatprep.mubr.f32.mxu0 0.0
        %1603 = vmatmul.mubr.f32.gmra.mxu0 %v1465
        %v1604 = vpop.f32.mrf.mxu0
        %v1605 = vadd.f32 0.0, %v1604
        %v1606 = vpop.f32.mrf.mxu0
        %1607 = vmatprep.mubr.f32.mxu0 0.0
        %1608 = vmatmul.mubr.f32.gmra.mxu0 %v1468
        %v1609 = vpop.f32.mrf.mxu0
        %v1610 = vadd.f32 0.0, %v1609
        %v1611 = vpop.f32.mrf.mxu0
        %1612 = vmatprep.mubr.f32.mxu0 0.0
        %1613 = vmatmul.mubr.f32.gmra.mxu0 %v1471
        %v1614 = vpop.f32.mrf.mxu0
        %v1615 = vadd.f32 0.0, %v1614
        %v1616 = vpop.f32.mrf.mxu0
        %1617 = vdwg.mxu0
        %v1618 = vrot.slane %v1392, 4
        %v1619 = vadd.f32 %v1392, %v1618
        %v1620 = vrot.slane %v1619, 2
        %v1621 = vadd.f32 %v1619, %v1620
        %v1622 = vrot.slane %v1621, 1
        %v1623 = vadd.f32 %v1621, %v1622
        %1624 = vmatprep.subr.mxu0 0.0
        %1625 = vmatpush1.msra.mxu0 %v1194
        %1626 = vmatprep.subr.mxu0 0.0
        %1627 = vmatpush1.msra.mxu0 %v1193
        %1628 = vmatprep.subr.mxu0 0.0
        %1629 = vmatpush1.msra.mxu0 %v1192
        %1630 = vmatprep.subr.mxu0 0.0
        %1631 = vmatpush1.msra.mxu0 %v1191
        %1632 = vmatprep.subr.mxu0 0.0
        %1633 = vmatpush1.msra.mxu0 %v1190
        %1634 = vmatprep.subr.mxu0 0.0
        %1635 = vmatpush1.msra.mxu0 %v1189
        %1636 = vmatprep.subr.mxu0 0.0
        %1637 = vmatpush1.msra.mxu0 %v1188
        %1638 = vmatprep.subr.mxu0 0.0
        %1639 = vmatpush1.msra.mxu0 %v1187
        %1640 = vmatprep.subr.mxu0 0.0
        %1641 = vmatpush1.msra.mxu0 %v1186
        %1642 = vmatprep.subr.mxu0 0.0
        %1643 = vmatpush1.msra.mxu0 %v1185
        %1644 = vmatprep.subr.mxu0 0.0
        %1645 = vmatpush1.msra.mxu0 %v1184
        %1646 = vmatprep.subr.mxu0 0.0
        %1647 = vmatpush1.msra.mxu0 %v1183
        %1648 = vmatprep.subr.mxu0 0.0
        %1649 = vmatpush1.msra.mxu0 %v1182
        %1650 = vmatprep.subr.mxu0 0.0
        %1651 = vmatpush1.msra.mxu0 %v1181
        %1652 = vmatprep.subr.mxu0 0.0
        %1653 = vmatpush1.msra.mxu0 %v1180
        %1654 = vmatprep.subr.mxu0 0.0
        %1655 = vmatpush1.msra.mxu0 %v1179
        %1656 = vmatprep.subr.mxu0 0.0
        %1657 = vmatpush2.msra.mxu0 0.0
        %1658 = vmatprep.subr.mxu0 0.0
        %1659 = vmatpush2.msra.mxu0 0.0
        %1660 = vmatprep.subr.mxu0 0.0
        %1661 = vmatpush2.msra.mxu0 0.0
        %1662 = vmatprep.subr.mxu0 0.0
        %1663 = vmatpush2.msra.mxu0 0.0
        %1664 = vmatprep.subr.mxu0 0.0
        %1665 = vmatpush2.msra.mxu0 0.0
        %1666 = vmatprep.subr.mxu0 0.0
        %1667 = vmatpush2.msra.mxu0 0.0
        %1668 = vmatprep.subr.mxu0 0.0
        %1669 = vmatpush2.msra.mxu0 0.0
        %1670 = vmatprep.subr.mxu0 0.0
        %1671 = vmatpush2.msra.mxu0 0.0
        %1672 = vmatprep.subr.mxu0 0.0
        %1673 = vmatpush2.msra.mxu0 0.0
        %1674 = vmatprep.subr.mxu0 0.0
        %1675 = vmatpush2.msra.mxu0 0.0
        %1676 = vmatprep.subr.mxu0 0.0
        %1677 = vmatpush2.msra.mxu0 0.0
        %1678 = vmatprep.subr.mxu0 0.0
        %1679 = vmatpush2.msra.mxu0 0.0
        %1680 = vmatprep.subr.mxu0 0.0
        %1681 = vmatpush2.msra.mxu0 0.0
        %1682 = vmatprep.subr.mxu0 0.0
        %1683 = vmatpush2.msra.mxu0 0.0
        %1684 = vmatprep.subr.mxu0 0.0
        %1685 = vmatpush2.msra.mxu0 0.0
        %1686 = vmatprep.subr.mxu0 0.0
        %1687 = vmatpush2.msra.mxu0 0.0
        %1688 = vmatprep.mubr.f32.mxu0 0.0
        %1689 = vmatmul.mubr.f32.gmra.mxu0 %v1392
        %v1690 = vpop.f32.mrf.mxu0
        %v1691 = vadd.f32 0.0, %v1690
        %v1692 = vpop.f32.mrf.mxu0
        %1693 = vdwg.mxu0
        %vm1694 = vcmp.gt.f32.partialorder %v1274, 0.0
        %v1695 = vsel %vm1694, %v1691, 0.0
        %1696 = vxpose.xlu0.b32.start [1/16] %v1695, 128
        %1697 = vxpose.xlu0.b32.cont [2/16] 0.0, 128
        %1698 = vxpose.xlu0.b32.cont [3/16] 0.0, 128
        %1699 = vxpose.xlu0.b32.cont [4/16] 0.0, 128
        %1700 = vxpose.xlu0.b32.cont [5/16] 0.0, 128
        %1701 = vxpose.xlu0.b32.cont [6/16] 0.0, 128
        %1702 = vxpose.xlu0.b32.cont [7/16] 0.0, 128
        %1703 = vxpose.xlu0.b32.cont [8/16] 0.0, 128
        %1704 = vxpose.xlu0.b32.cont [9/16] 0.0, 128
        %1705 = vxpose.xlu0.b32.cont [10/16] 0.0, 128
        %1706 = vxpose.xlu0.b32.cont [11/16] 0.0, 128
        %1707 = vxpose.xlu0.b32.cont [12/16] 0.0, 128
        %1708 = vxpose.xlu0.b32.cont [13/16] 0.0, 128
        %1709 = vxpose.xlu0.b32.cont [14/16] 0.0, 128
        %1710 = vxpose.xlu0.b32.cont [15/16] 0.0, 128
        %1711 = vxpose.xlu0.b32.end [16/16] 0.0, 128
        %v1712 = vpop.trf.xlu0
        %v1713 = vpop.trf.xlu0
        %v1714 = vpop.trf.xlu0
        %v1715 = vpop.trf.xlu0
        %v1716 = vpop.trf.xlu0
        %v1717 = vpop.trf.xlu0
        %v1718 = vpop.trf.xlu0
        %v1719 = vpop.trf.xlu0
        %v1720 = vpop.trf.xlu0
        %v1721 = vpop.trf.xlu0
        %v1722 = vpop.trf.xlu0
        %v1723 = vpop.trf.xlu0
        %v1724 = vpop.trf.xlu0
        %v1725 = vpop.trf.xlu0
        %v1726 = vpop.trf.xlu0
        %v1727 = vpop.trf.xlu0
        %v1729 = vsel %vm626, %v1712, 0
        %v1732 = vsel %vm626, %v1713, 0
        %v1735 = vsel %vm626, %v1714, 0
        %v1738 = vsel %vm626, %v1715, 0
        %v1741 = vsel %vm626, %v1716, 0
        %v1744 = vsel %vm626, %v1717, 0
        %v1747 = vsel %vm626, %v1718, 0
        %v1750 = vsel %vm626, %v1719, 0
        %v1753 = vsel %vm626, %v1720, 0
        %v1756 = vsel %vm626, %v1721, 0
        %v1759 = vsel %vm626, %v1722, 0
        %v1762 = vsel %vm626, %v1723, 0
        %v1765 = vsel %vm626, %v1724, 0
        %v1768 = vsel %vm626, %v1725, 0
        %v1771 = vsel %vm626, %v1726, 0
        %v1774 = vsel %vm626, %v1727, 0
        %1776 = vmatprep.subr.mxu0 0.0
        %1777 = vmatpush1.msra.mxu0 0.0
        %1778 = vmatprep.subr.mxu0 0.0
        %1779 = vmatpush1.msra.mxu0 0.0
        %1780 = vmatprep.subr.mxu0 0.0
        %1781 = vmatpush1.msra.mxu0 0.0
        %1782 = vmatprep.subr.mxu0 0.0
        %1783 = vmatpush1.msra.mxu0 0.0
        %1784 = vmatprep.subr.mxu0 0.0
        %1785 = vmatpush1.msra.mxu0 0.0
        %1786 = vmatprep.subr.mxu0 0.0
        %1787 = vmatpush1.msra.mxu0 0.0
        %1788 = vmatprep.subr.mxu0 0.0
        %1789 = vmatpush1.msra.mxu0 0.0
        %1790 = vmatprep.subr.mxu0 0.0
        %1791 = vmatpush1.msra.mxu0 0.0
        %1792 = vmatprep.subr.mxu0 0.0
        %1793 = vmatpush1.msra.mxu0 0.0
        %1794 = vmatprep.subr.mxu0 0.0
        %1795 = vmatpush1.msra.mxu0 0.0
        %1796 = vmatprep.subr.mxu0 0.0
        %1797 = vmatpush1.msra.mxu0 0.0
        %1798 = vmatprep.subr.mxu0 0.0
        %1799 = vmatpush1.msra.mxu0 0.0
        %1800 = vmatprep.subr.mxu0 0.0
        %1801 = vmatpush1.msra.mxu0 0.0
        %1802 = vmatprep.subr.mxu0 0.0
        %1803 = vmatpush1.msra.mxu0 0.0
        %1804 = vmatprep.subr.mxu0 0.0
        %1805 = vmatpush1.msra.mxu0 0.0
        %1806 = vmatprep.subr.mxu0 0.0
        %1807 = vmatpush1.msra.mxu0 %v362
        %1808 = vmatprep.subr.mxu0 0.0
        %1809 = vmatpush2.msra.mxu0 0.0
        %1810 = vmatprep.subr.mxu0 0.0
        %1811 = vmatpush2.msra.mxu0 0.0
        %1812 = vmatprep.subr.mxu0 0.0
        %1813 = vmatpush2.msra.mxu0 0.0
        %1814 = vmatprep.subr.mxu0 0.0
        %1815 = vmatpush2.msra.mxu0 0.0
        %1816 = vmatprep.subr.mxu0 0.0
        %1817 = vmatpush2.msra.mxu0 0.0
        %1818 = vmatprep.subr.mxu0 0.0
        %1819 = vmatpush2.msra.mxu0 0.0
        %1820 = vmatprep.subr.mxu0 0.0
        %1821 = vmatpush2.msra.mxu0 0.0
        %1822 = vmatprep.subr.mxu0 0.0
        %1823 = vmatpush2.msra.mxu0 0.0
        %1824 = vmatprep.subr.mxu0 0.0
        %1825 = vmatpush2.msra.mxu0 0.0
        %1826 = vmatprep.subr.mxu0 0.0
        %1827 = vmatpush2.msra.mxu0 0.0
        %1828 = vmatprep.subr.mxu0 0.0
        %1829 = vmatpush2.msra.mxu0 0.0
        %1830 = vmatprep.subr.mxu0 0.0
        %1831 = vmatpush2.msra.mxu0 0.0
        %1832 = vmatprep.subr.mxu0 0.0
        %1833 = vmatpush2.msra.mxu0 0.0
        %1834 = vmatprep.subr.mxu0 0.0
        %1835 = vmatpush2.msra.mxu0 0.0
        %1836 = vmatprep.subr.mxu0 0.0
        %1837 = vmatpush2.msra.mxu0 0.0
        %1838 = vmatprep.subr.mxu0 0.0
        %1839 = vmatpush2.msra.mxu0 0.0
        %1840 = vmatprep.mubr.f32.mxu0 0.0
        %1841 = vmatmul.mubr.f32.gmra.mxu0 %v1729
        %v1842 = vpop.f32.mrf.mxu0
        %v1843 = vadd.f32 0.0, %v1842
        %v1844 = vpop.f32.mrf.mxu0
        %1845 = vmatprep.mubr.f32.mxu0 0.0
        %1846 = vmatmul.mubr.f32.gmra.mxu0 %v1732
        %v1847 = vpop.f32.mrf.mxu0
        %v1848 = vadd.f32 0.0, %v1847
        %v1849 = vpop.f32.mrf.mxu0
        %1850 = vmatprep.mubr.f32.mxu0 0.0
        %1851 = vmatmul.mubr.f32.gmra.mxu0 %v1735
        %v1852 = vpop.f32.mrf.mxu0
        %v1853 = vadd.f32 0.0, %v1852
        %v1854 = vpop.f32.mrf.mxu0
        %1855 = vmatprep.mubr.f32.mxu0 0.0
        %1856 = vmatmul.mubr.f32.gmra.mxu0 %v1738
        %v1857 = vpop.f32.mrf.mxu0
        %v1858 = vadd.f32 0.0, %v1857
        %v1859 = vpop.f32.mrf.mxu0
        %1860 = vmatprep.mubr.f32.mxu0 0.0
        %1861 = vmatmul.mubr.f32.gmra.mxu0 %v1741
        %v1862 = vpop.f32.mrf.mxu0
        %v1863 = vadd.f32 0.0, %v1862
        %v1864 = vpop.f32.mrf.mxu0
        %1865 = vmatprep.mubr.f32.mxu0 0.0
        %1866 = vmatmul.mubr.f32.gmra.mxu0 %v1744
        %v1867 = vpop.f32.mrf.mxu0
        %v1868 = vadd.f32 0.0, %v1867
        %v1869 = vpop.f32.mrf.mxu0
        %1870 = vmatprep.mubr.f32.mxu0 0.0
        %1871 = vmatmul.mubr.f32.gmra.mxu0 %v1747
        %v1872 = vpop.f32.mrf.mxu0
        %v1873 = vadd.f32 0.0, %v1872
        %v1874 = vpop.f32.mrf.mxu0
        %1875 = vmatprep.mubr.f32.mxu0 0.0
        %1876 = vmatmul.mubr.f32.gmra.mxu0 %v1750
        %v1877 = vpop.f32.mrf.mxu0
        %v1878 = vadd.f32 0.0, %v1877
        %v1879 = vpop.f32.mrf.mxu0
        %1880 = vmatprep.mubr.f32.mxu0 0.0
        %1881 = vmatmul.mubr.f32.gmra.mxu0 %v1753
        %v1882 = vpop.f32.mrf.mxu0
        %v1883 = vadd.f32 0.0, %v1882
        %v1884 = vpop.f32.mrf.mxu0
        %1885 = vmatprep.mubr.f32.mxu0 0.0
        %1886 = vmatmul.mubr.f32.gmra.mxu0 %v1756
        %v1887 = vpop.f32.mrf.mxu0
        %v1888 = vadd.f32 0.0, %v1887
        %v1889 = vpop.f32.mrf.mxu0
        %1890 = vmatprep.mubr.f32.mxu0 0.0
        %1891 = vmatmul.mubr.f32.gmra.mxu0 %v1759
        %v1892 = vpop.f32.mrf.mxu0
        %v1893 = vadd.f32 0.0, %v1892
        %v1894 = vpop.f32.mrf.mxu0
        %1895 = vmatprep.mubr.f32.mxu0 0.0
        %1896 = vmatmul.mubr.f32.gmra.mxu0 %v1762
        %v1897 = vpop.f32.mrf.mxu0
        %v1898 = vadd.f32 0.0, %v1897
        %v1899 = vpop.f32.mrf.mxu0
        %1900 = vmatprep.mubr.f32.mxu0 0.0
        %1901 = vmatmul.mubr.f32.gmra.mxu0 %v1765
        %v1902 = vpop.f32.mrf.mxu0
        %v1903 = vadd.f32 0.0, %v1902
        %v1904 = vpop.f32.mrf.mxu0
        %1905 = vmatprep.mubr.f32.mxu0 0.0
        %1906 = vmatmul.mubr.f32.gmra.mxu0 %v1768
        %v1907 = vpop.f32.mrf.mxu0
        %v1908 = vadd.f32 0.0, %v1907
        %v1909 = vpop.f32.mrf.mxu0
        %1910 = vmatprep.mubr.f32.mxu0 0.0
        %1911 = vmatmul.mubr.f32.gmra.mxu0 %v1771
        %v1912 = vpop.f32.mrf.mxu0
        %v1913 = vadd.f32 0.0, %v1912
        %v1914 = vpop.f32.mrf.mxu0
        %1915 = vmatprep.mubr.f32.mxu0 0.0
        %1916 = vmatmul.mubr.f32.gmra.mxu0 %v1774
        %v1917 = vpop.f32.mrf.mxu0
        %v1918 = vadd.f32 0.0, %v1917
        %v1919 = vpop.f32.mrf.mxu0
        %1920 = vdwg.mxu0
        %v1921 = vrot.slane %v1695, 4
        %v1922 = vadd.f32 %v1695, %v1921
        %v1923 = vrot.slane %v1922, 2
        %v1924 = vadd.f32 %v1922, %v1923
        %v1925 = vrot.slane %v1924, 1
        %v1926 = vadd.f32 %v1924, %v1925
        %v1927 = vmul.f32 %v1843, 0.005
        %v1928 = vmul.f32 %v1848, 0.005
        %v1929 = vmul.f32 %v1853, 0.005
        %v1930 = vmul.f32 %v1858, 0.005
        %v1931 = vmul.f32 %v1863, 0.005
        %v1932 = vmul.f32 %v1868, 0.005
        %v1933 = vmul.f32 %v1873, 0.005
        %v1934 = vmul.f32 %v1878, 0.005
        %v1935 = vmul.f32 %v1883, 0.005
        %v1936 = vmul.f32 %v1888, 0.005
        %v1937 = vmul.f32 %v1893, 0.005
        %v1938 = vmul.f32 %v1898, 0.005
        %v1939 = vmul.f32 %v1903, 0.005
        %v1940 = vmul.f32 %v1908, 0.005
        %v1941 = vmul.f32 %v1913, 0.005
        %v1942 = vmul.f32 %v1918, 0.005
        %v1943 = vsub.f32 %v1145, %v1927
        %v1944 = vsub.f32 %v1146, %v1928
        %v1945 = vsub.f32 %v1147, %v1929
        %v1946 = vsub.f32 %v1148, %v1930
        %v1947 = vsub.f32 %v1149, %v1931
        %v1948 = vsub.f32 %v1150, %v1932
        %v1949 = vsub.f32 %v1151, %v1933
        %v1950 = vsub.f32 %v1152, %v1934
        %v1951 = vsub.f32 %v1153, %v1935
        %v1952 = vsub.f32 %v1154, %v1936
        %v1953 = vsub.f32 %v1155, %v1937
        %v1954 = vsub.f32 %v1156, %v1938
        %v1955 = vsub.f32 %v1157, %v1939
        %v1956 = vsub.f32 %v1158, %v1940
        %v1957 = vsub.f32 %v1159, %v1941
        %v1958 = vsub.f32 %v1160, %v1942
        %v1959 = vmul.f32 %v1926, 0.005
        %v1960 = vsub.f32 %v1162, %v1959
        %v1961 = vmul.f32 %v1540, 0.005
        %v1962 = vmul.f32 %v1545, 0.005
        %v1963 = vmul.f32 %v1550, 0.005
        %v1964 = vmul.f32 %v1555, 0.005
        %v1965 = vmul.f32 %v1560, 0.005
        %v1966 = vmul.f32 %v1565, 0.005
        %v1967 = vmul.f32 %v1570, 0.005
        %v1968 = vmul.f32 %v1575, 0.005
        %v1969 = vmul.f32 %v1580, 0.005
        %v1970 = vmul.f32 %v1585, 0.005
        %v1971 = vmul.f32 %v1590, 0.005
        %v1972 = vmul.f32 %v1595, 0.005
        %v1973 = vmul.f32 %v1600, 0.005
        %v1974 = vmul.f32 %v1605, 0.005
        %v1975 = vmul.f32 %v1610, 0.005
        %v1976 = vmul.f32 %v1615, 0.005
        %v1977 = vsub.f32 %v1179, %v1961
        %v1978 = vsub.f32 %v1180, %v1962
        %v1979 = vsub.f32 %v1181, %v1963
        %v1980 = vsub.f32 %v1182, %v1964
        %v1981 = vsub.f32 %v1183, %v1965
        %v1982 = vsub.f32 %v1184, %v1966
        %v1983 = vsub.f32 %v1185, %v1967
        %v1984 = vsub.f32 %v1186, %v1968
        %v1985 = vsub.f32 %v1187, %v1969
        %v1986 = vsub.f32 %v1188, %v1970
        %v1987 = vsub.f32 %v1189, %v1971
        %v1988 = vsub.f32 %v1190, %v1972
        %v1989 = vsub.f32 %v1191, %v1973
        %v1990 = vsub.f32 %v1192, %v1974
        %v1991 = vsub.f32 %v1193, %v1975
        %v1992 = vsub.f32 %v1194, %v1976
        %v1993 = vmul.f32 %v1623, 0.005
        %v1994 = vsub.f32 %v1196, %v1993
        %v1995 = vmul.f32 %v1379, 0.005
        %v1996 = vsub.f32 %v1198, %v1995
        %s1997 = smul.f32 %s1389, 0.005
        %s1998 = ssub.f32 %s1200, %s1997
        %v2000 = vlaneseq
        %v2001 = vshrl.u32 %v2000, 7
        %v2002 = vsub.s32 0, %v2001
        %v2003 = vrot.slane %v1960, %v2002
        %2005 = vmatprep.subr.mxu0 0.0
        %2006 = vmatpush1.xpose.msra.mxu0 %v1958
        %2007 = vmatprep.subr.mxu0 0.0
        %2008 = vmatpush1.xpose.msra.mxu0 %v1957
        %2009 = vmatprep.subr.mxu0 0.0
        %2010 = vmatpush1.xpose.msra.mxu0 %v1956
        %2011 = vmatprep.subr.mxu0 0.0
        %2012 = vmatpush1.xpose.msra.mxu0 %v1955
        %2013 = vmatprep.subr.mxu0 0.0
        %2014 = vmatpush1.xpose.msra.mxu0 %v1954
        %2015 = vmatprep.subr.mxu0 0.0
        %2016 = vmatpush1.xpose.msra.mxu0 %v1953
        %2017 = vmatprep.subr.mxu0 0.0
        %2018 = vmatpush1.xpose.msra.mxu0 %v1952
        %2019 = vmatprep.subr.mxu0 0.0
        %2020 = vmatpush1.xpose.msra.mxu0 %v1951
        %2021 = vmatprep.subr.mxu0 0.0
        %2022 = vmatpush1.xpose.msra.mxu0 %v1950
        %2023 = vmatprep.subr.mxu0 0.0
        %2024 = vmatpush1.xpose.msra.mxu0 %v1949
        %2025 = vmatprep.subr.mxu0 0.0
        %2026 = vmatpush1.xpose.msra.mxu0 %v1948
        %2027 = vmatprep.subr.mxu0 0.0
        %2028 = vmatpush1.xpose.msra.mxu0 %v1947
        %2029 = vmatprep.subr.mxu0 0.0
        %2030 = vmatpush1.xpose.msra.mxu0 %v1946
        %2031 = vmatprep.subr.mxu0 0.0
        %2032 = vmatpush1.xpose.msra.mxu0 %v1945
        %2033 = vmatprep.subr.mxu0 0.0
        %2034 = vmatpush1.xpose.msra.mxu0 %v1944
        %2035 = vmatprep.subr.mxu0 0.0
        %2036 = vmatpush1.xpose.msra.mxu0 %v1943
        %2037 = vmatprep.subr.mxu0 0.0
        %2038 = vmatpush2.xpose.msra.mxu0 0.0
        %2039 = vmatprep.subr.mxu0 0.0
        %2040 = vmatpush2.xpose.msra.mxu0 0.0
        %2041 = vmatprep.subr.mxu0 0.0
        %2042 = vmatpush2.xpose.msra.mxu0 0.0
        %2043 = vmatprep.subr.mxu0 0.0
        %2044 = vmatpush2.xpose.msra.mxu0 0.0
        %2045 = vmatprep.subr.mxu0 0.0
        %2046 = vmatpush2.xpose.msra.mxu0 0.0
        %2047 = vmatprep.subr.mxu0 0.0
        %2048 = vmatpush2.xpose.msra.mxu0 0.0
        %2049 = vmatprep.subr.mxu0 0.0
        %2050 = vmatpush2.xpose.msra.mxu0 0.0
        %2051 = vmatprep.subr.mxu0 0.0
        %2052 = vmatpush2.xpose.msra.mxu0 0.0
        %2053 = vmatprep.subr.mxu0 0.0
        %2054 = vmatpush2.xpose.msra.mxu0 0.0
        %2055 = vmatprep.subr.mxu0 0.0
        %2056 = vmatpush2.xpose.msra.mxu0 0.0
        %2057 = vmatprep.subr.mxu0 0.0
        %2058 = vmatpush2.xpose.msra.mxu0 0.0
        %2059 = vmatprep.subr.mxu0 0.0
        %2060 = vmatpush2.xpose.msra.mxu0 0.0
        %2061 = vmatprep.subr.mxu0 0.0
        %2062 = vmatpush2.xpose.msra.mxu0 0.0
        %2063 = vmatprep.subr.mxu0 0.0
        %2064 = vmatpush2.xpose.msra.mxu0 0.0
        %2065 = vmatprep.subr.mxu0 0.0
        %2066 = vmatpush2.xpose.msra.mxu0 0.0
        %2067 = vmatprep.subr.mxu0 0.0
        %2068 = vmatpush2.xpose.msra.mxu0 0.0
        %2069 = vmatprep.mubr.f32.mxu0 0.0
        %2070 = vmatmul.mubr.f32.gmra.mxu0 %v364
        %v2071 = vpop.f32.mrf.mxu0
        %v2072 = vadd.f32 %v2003, %v2071
        %v2073 = vpop.f32.mrf.mxu0
        %2074 = vdwg.mxu0
        %v2075 = vmax.f32 %v2072, 0.0
        %v2077 = vlaneseq
        %v2078 = vshrl.u32 %v2077, 7
        %v2079 = vsub.s32 0, %v2078
        %v2080 = vrot.slane %v1994, %v2079
        %2082 = vmatprep.subr.mxu0 0.0
        %2083 = vmatpush1.xpose.msra.mxu0 %v1992
        %2084 = vmatprep.subr.mxu0 0.0
        %2085 = vmatpush1.xpose.msra.mxu0 %v1991
        %2086 = vmatprep.subr.mxu0 0.0
        %2087 = vmatpush1.xpose.msra.mxu0 %v1990
        %2088 = vmatprep.subr.mxu0 0.0
        %2089 = vmatpush1.xpose.msra.mxu0 %v1989
        %2090 = vmatprep.subr.mxu0 0.0
        %2091 = vmatpush1.xpose.msra.mxu0 %v1988
        %2092 = vmatprep.subr.mxu0 0.0
        %2093 = vmatpush1.xpose.msra.mxu0 %v1987
        %2094 = vmatprep.subr.mxu0 0.0
        %2095 = vmatpush1.xpose.msra.mxu0 %v1986
        %2096 = vmatprep.subr.mxu0 0.0
        %2097 = vmatpush1.xpose.msra.mxu0 %v1985
        %2098 = vmatprep.subr.mxu0 0.0
        %2099 = vmatpush1.xpose.msra.mxu0 %v1984
        %2100 = vmatprep.subr.mxu0 0.0
        %2101 = vmatpush1.xpose.msra.mxu0 %v1983
        %2102 = vmatprep.subr.mxu0 0.0
        %2103 = vmatpush1.xpose.msra.mxu0 %v1982
        %2104 = vmatprep.subr.mxu0 0.0
        %2105 = vmatpush1.xpose.msra.mxu0 %v1981
        %2106 = vmatprep.subr.mxu0 0.0
        %2107 = vmatpush1.xpose.msra.mxu0 %v1980
        %2108 = vmatprep.subr.mxu0 0.0
        %2109 = vmatpush1.xpose.msra.mxu0 %v1979
        %2110 = vmatprep.subr.mxu0 0.0
        %2111 = vmatpush1.xpose.msra.mxu0 %v1978
        %2112 = vmatprep.subr.mxu0 0.0
        %2113 = vmatpush1.xpose.msra.mxu0 %v1977
        %2114 = vmatprep.subr.mxu0 0.0
        %2115 = vmatpush2.xpose.msra.mxu0 0.0
        %2116 = vmatprep.subr.mxu0 0.0
        %2117 = vmatpush2.xpose.msra.mxu0 0.0
        %2118 = vmatprep.subr.mxu0 0.0
        %2119 = vmatpush2.xpose.msra.mxu0 0.0
        %2120 = vmatprep.subr.mxu0 0.0
        %2121 = vmatpush2.xpose.msra.mxu0 0.0
        %2122 = vmatprep.subr.mxu0 0.0
        %2123 = vmatpush2.xpose.msra.mxu0 0.0
        %2124 = vmatprep.subr.mxu0 0.0
        %2125 = vmatpush2.xpose.msra.mxu0 0.0
        %2126 = vmatprep.subr.mxu0 0.0
        %2127 = vmatpush2.xpose.msra.mxu0 0.0
        %2128 = vmatprep.subr.mxu0 0.0
        %2129 = vmatpush2.xpose.msra.mxu0 0.0
        %2130 = vmatprep.subr.mxu0 0.0
        %2131 = vmatpush2.xpose.msra.mxu0 0.0
        %2132 = vmatprep.subr.mxu0 0.0
        %2133 = vmatpush2.xpose.msra.mxu0 0.0
        %2134 = vmatprep.subr.mxu0 0.0
        %2135 = vmatpush2.xpose.msra.mxu0 0.0
        %2136 = vmatprep.subr.mxu0 0.0
        %2137 = vmatpush2.xpose.msra.mxu0 0.0
        %2138 = vmatprep.subr.mxu0 0.0
        %2139 = vmatpush2.xpose.msra.mxu0 0.0
        %2140 = vmatprep.subr.mxu0 0.0
        %2141 = vmatpush2.xpose.msra.mxu0 0.0
        %2142 = vmatprep.subr.mxu0 0.0
        %2143 = vmatpush2.xpose.msra.mxu0 0.0
        %2144 = vmatprep.subr.mxu0 0.0
        %2145 = vmatpush2.xpose.msra.mxu0 0.0
        %2146 = vmatprep.mubr.f32.mxu0 0.0
        %2147 = vmatmul.mubr.f32.gmra.mxu0 %v2075
        %v2148 = vpop.f32.mrf.mxu0
        %v2149 = vadd.f32 %v2080, %v2148
        %v2150 = vpop.f32.mrf.mxu0
        %2151 = vdwg.mxu0
        %v2152 = vmax.f32 %v2149, 0.0
        %v2154 = vlaneseq
        %v2155 = vshrl.u32 %v2154, 7
        %v2156 = vsub.s32 0, %v2155
        %v2157 = vrot.slane %v1996, %v2156
        %v2159 = vmul.f32 %v2152, %v2157
        %2160 = vadd.xlane.f32.xlu0 %v2159
        %v2161 = vpop.xlane.xlu0 %2160
        %v2162 = vstv %s1998
        %v2163 = vadd.f32 %v2161, %v2162
        %v2165 = vlaneseq
        %v2166 = vand.u32 %v2165, 127
        %v2167 = vlaneseq
        %v2168 = vshrl.u32 %v2167, 7
        %v2169 = vsub.s32 %v2166, %v2168
        %v2170 = vrot.slane %v2163, %v2169
        %vm2172 = vcmask 57344
        %2173 = vst.msk [vmem:[%s349] sm:$0x1] %vm2172, %v2170
        %s2174 = sand.u32 %s236, 1
        %s2175 = scalar_lea.sflag [#allocation4], %s2174
        %s2176 = sand.u32 %s236, 1
        %s2177 = scalar_lea.vmem [#allocation3], %s2176
        // Predicated region
        $region57: #{melu_forward.1} parent=55 // pred_check
          %p2178 = pneg %p246
        $region58: #{melu_forward.1} parent=55 // pred_check_branch
          %2180 = sbr.rel (%p2178) target = $region60
        $region59: #{melu_forward.1} parent=55 // pred_region
          %s2182 = ssub.s32 16, 16
          %2183 = vsyncadd %s2175, %s2182
          %s2184 = smul.addr %s24, 16
          %s2185 = scalar_lea.hbm %s9, %s2184
          %s2187 = sshll.u32 %s2177, 4
          %s2188 = int_to_ptr.vmem [resolvable:$true] %s2187
          %2190 = dma.vmem_to_hbm [thread:$0]  %s2188, 16, %s2185, %s2175
        $region60: #{melu_forward.1} parent=55 // pred_fallthru
          _
      $region56: #{melu_forward.1} parent=5 // pred_fallthru
        _
      %p2191 = scmp.le.s32.totalorder 2, %s19
      // Predicated region
      $region61: #{melu_forward.1} parent=5 // pred_check
        %p2192 = pneg %p2191
      $region62: #{melu_forward.1} parent=5 // pred_check_branch
        %2194 = sbr.rel (%p2192) target = $region64
      $region63: #{melu_forward.1} parent=5 // pred_region
        %s2195 = ssub.s32 %s19, 2
        // Predicated region
        $region65: #{melu_forward.1} parent=63 // pred_check
          %p2196 = pneg %p252
        $region66: #{melu_forward.1} parent=63 // pred_check_branch
          %2198 = sbr.rel (%p2196) target = $region68
        $region67: #{melu_forward.1} parent=63 // pred_region
          %s2199 = sand.u32 %s237, 1
          %s2200 = scalar_lea.sflag [#allocation4], %s2199
          %s2201 = sand.u32 %s237, 1
          %s2202 = scalar_lea.vmem [#allocation3], %s2201
          %2203 = dma.done %s2200, 16
        $region68: #{melu_forward.1} parent=63 // pred_fallthru
          _
      $region64: #{melu_forward.1} parent=5 // pred_fallthru
        _
    $region6: #{melu_forward.1} parent=1 // loop_footer
      %s23 = sadd.s32 1, %s19
    $region7: #{melu_forward.1} parent=1 // loop_footer_branch
      %18 = sbr.rel target = $region3
    $region8: #{melu_forward.1} parent=1 // loop_exit
      _
    %2204 = vsyncpa [#allocation4], 1
    %s2205 = scalar_lea.sflag [#allocation4], 1
    %2206 = vsyncpa %s2205, 1

</llo_original>
